<compile_context>
chip_gen: v5e
topology: v5e:2x2
jax: 0.10.0
libtpu: 0.0.40
codegen_flags: <defaults>
</compile_context>

<pallas_src>
import functools
import math

import jax
import jax.numpy as jnp
from jax.experimental import pallas as pl
from jax.experimental.pallas import tpu as pltpu


def _round_up(x, m):
    return (x + m - 1) // m * m


# ------------------------------ Pallas kernel -------------------------------

def fc_fused_kernel(x_ref, wt_ref, b_ref, gamma_ref, beta_ref, o_ref,
                    y_scr, sum_scr, ssq_scr, *,
                    tile_c, valid_cols, padded_cols, eps, apply_relu,
                    use_vpu_matmul):
    """Fused 1x1-conv + BatchNorm(batch statistics) + optional ReLU for one layer.

    Transposed, lane-dense layout: activations are [channels, rows].

    grid = (3, num_col_tiles); phase axis 0:
      phase 0: y = W^T @ x + b  -> resident VMEM scratch; accumulate per-channel sum
      phase 1: accumulate centered sum of squares (two-pass variance)
      phase 2: normalize + affine (+ relu), store the lane-dense output tile
    """
    p = pl.program_id(0)
    j = pl.program_id(1)
    col0 = pl.multiple_of(j * tile_c, tile_c)

    needs_mask = valid_cols < padded_cols
    if needs_mask:
        lane = jax.lax.broadcasted_iota(jnp.int32, (1, tile_c), 1) + col0
        mask = (lane < valid_cols).astype(jnp.float32)            # (1, tile_c)

    inv_count = 1.0 / float(valid_cols)

    @pl.when(p == 0)
    def _():
        @pl.when(j == 0)
        def _():
            sum_scr[...] = jnp.zeros_like(sum_scr)
            ssq_scr[...] = jnp.zeros_like(ssq_scr)

        x = x_ref[...]                                            # (din, tile_c)
        if use_vpu_matmul:
            # Tiny K (e.g. 4): a few VPU broadcast-FMAs beat an almost-empty MXU matmul.
            din = x_ref.shape[0]
            acc = wt_ref[:, 0:1] * x[0:1, :]
            for k in range(1, din):
                acc = acc + wt_ref[:, k:k + 1] * x[k:k + 1, :]
            y = acc + b_ref[...]
        else:
            y = jnp.dot(wt_ref[...], x,
                        preferred_element_type=jnp.float32) + b_ref[...]
        y_scr[:, pl.ds(col0, tile_c)] = y
        ys = y * mask if needs_mask else y
        sum_scr[...] = sum_scr[...] + jnp.sum(ys, axis=1, keepdims=True)

    @pl.when(p == 1)
    def _():
        mean = sum_scr[...] * inv_count                           # (dout, 1)
        d = y_scr[:, pl.ds(col0, tile_c)] - mean
        if needs_mask:
            d = d * mask
        ssq_scr[...] = ssq_scr[...] + jnp.sum(d * d, axis=1, keepdims=True)

    @pl.when(p == 2)
    def _():
        mean = sum_scr[...] * inv_count
        var = ssq_scr[...] * inv_count                            # biased var (BN train mode)
        scale = jax.lax.rsqrt(var + eps) * gamma_ref[...]
        out = (y_scr[:, pl.ds(col0, tile_c)] - mean) * scale + beta_ref[...]
        if apply_relu:
            out = jnp.maximum(out, 0.0)
        o_ref[...] = out


# ------------------------------ layer wrapper -------------------------------

def fc_layer(xT, w, b, gamma, beta, *, valid_cols, apply_relu, tile_c, eps=1e-5):
    """One conv2d_ layer on the transposed slab.

    xT: [din, cols] f32 (cols = padded row count, multiple of tile_c).
    Returns [dout, cols] f32.
    """
    din, cols = xT.shape
    dout = w.shape[1]
    assert cols % tile_c == 0
    num_tiles = cols // tile_c

    wT = jnp.transpose(w)            # (dout, din)
    bT = jnp.transpose(b)            # (dout, 1)
    gT = jnp.transpose(gamma)        # (dout, 1)
    betaT = jnp.transpose(beta)      # (dout, 1)

    # VMEM budget: resident y + double-buffered streaming blocks; must fit v7x's 64 MiB.
    y_bytes = dout * cols * 4
    stream_bytes = 2 * (din + dout) * tile_c * 4
    param_bytes = 4 * 2 * (dout * din + 3 * dout)
    needed = y_bytes + stream_bytes + param_bytes + (1 << 20)
    assert needed <= 48 * 2 ** 20, (
        "resident-y FC layer exceeds the VMEM envelope; reduce tile_c or shard rows")
    # TODO(synk): add a streaming (recompute-matmul) fallback for activations that do not
    # fit VMEM, and per-core partial stats so phase 0 can shard across v7x's two TensorCores.
    vmem_limit = int(min(max(needed * 2, 32 * 2 ** 20), 60 * 2 ** 20))

    kernel = functools.partial(
        fc_fused_kernel, tile_c=tile_c, valid_cols=int(valid_cols),
        padded_cols=int(cols), eps=eps, apply_relu=apply_relu,
        use_vpu_matmul=(din <= 8))

    return pl.pallas_call(
        kernel,
        out_shape=jax.ShapeDtypeStruct((dout, cols), jnp.float32),
        grid=(3, num_tiles),
        in_specs=[
            # x is only consumed in phase 0; park the window on tile 0 afterwards.
            pl.BlockSpec((din, tile_c), lambda p, j: (0, jnp.where(p == 0, j, 0))),
            pl.BlockSpec((dout, din), lambda p, j: (0, 0)),
            pl.BlockSpec((dout, 1), lambda p, j: (0, 0)),
            pl.BlockSpec((dout, 1), lambda p, j: (0, 0)),
            pl.BlockSpec((dout, 1), lambda p, j: (0, 0)),
        ],
        # Output is produced only in phase 2; lane-dense (tile_c is a multiple of 128).
        out_specs=pl.BlockSpec((dout, tile_c),
                               lambda p, j: (0, jnp.where(p == 2, j, 0))),
        scratch_shapes=[
            pltpu.VMEM((dout, cols), jnp.float32),   # resident pre-BN activations
            pltpu.VMEM((dout, 1), jnp.float32),      # per-channel sum
            pltpu.VMEM((dout, 1), jnp.float32),      # per-channel centered sum of squares
        ],
        compiler_params=pltpu.CompilerParams(
            dimension_semantics=("arbitrary", "arbitrary"),
            vmem_limit_bytes=vmem_limit),
    )(xT, wT, bT, gT, betaT)


# -------------------------------- FC module ---------------------------------

def init_fc_params(key, input_dims, units):
    """Matches conv2d_.__init__: xavier_uniform conv weight, zero bias, BN gamma=1/beta=0."""
    params = []
    for din, dout in zip(input_dims, units):
        key, wk = jax.random.split(key)
        bound = math.sqrt(6.0 / (din + dout))     # 1x1 conv: fan_in=din, fan_out=dout
        w = jax.random.uniform(wk, (din, dout), jnp.float32, -bound, bound)
        b = jnp.zeros((1, dout), jnp.float32)
        gamma = jnp.ones((1, dout), jnp.float32)
        beta = jnp.zeros((1, dout), jnp.float32)
        params.append((w, b, gamma, beta))
    return params


def fc_forward(x, params, activations, *, tile_cols=1024):
    """x: [B, T, N, D] channels-last.  Applies the stacked conv2d_ layers."""
    B, T, N, D = x.shape
    R = B * T * N
    h = jnp.transpose(x.reshape(R, D))                    # (D, R): rows on the lane axis
    tile_c = min(tile_cols, _round_up(R, 128))
    cols = _round_up(R, tile_c)
    if cols != R:
        h = jnp.pad(h, ((0, 0), (0, cols - R)))           # padded cols masked out of BN stats
    for (w, b, gamma, beta), act in zip(params, activations):
        h = fc_layer(h, w, b, gamma, beta, valid_cols=R,
                     apply_relu=(act is not None), tile_c=tile_c)
    out = jnp.transpose(h[:, :R])                         # (R, dout_last)
    return out.reshape(B, T, N, -1)


# ----------------------------- pure-JAX reference ----------------------------

def fc_reference(x, params, activations, eps=1e-5):
    B, T, N, D = x.shape
    h = x.reshape(B * T * N, D)
    for (w, b, gamma, beta), act in zip(params, activations):
        y = h @ w + b
        mean = jnp.mean(y, axis=0, keepdims=True)
        var = jnp.mean((y - mean) ** 2, axis=0, keepdims=True)
        y = (y - mean) / jnp.sqrt(var + eps) * gamma + beta
        if act is not None:
            y = jnp.maximum(y, 0.0)
        h = y
    return h.reshape(B, T, N, -1)


# ---------------------------------- main -------------------------------------

if __name__ == "__main__":
    # FC(input_dims=[4, 32], units=[32, 32], activations=[relu, None], bn_decay=0.1)
    B, T, N, D = 2, 8, 16, 4
    hidden = 32
    input_dims = [D, hidden]
    units = [hidden, hidden]
    activations = ["relu", None]      # non-None -> relu (as in conv2d_.forward)

    key = jax.random.PRNGKey(0)
    key, xk = jax.random.split(key)
    x = jax.random.normal(xk, (B, T, N, D), jnp.float32)
    params = init_fc_params(key, input_dims, units)

    # TODO(synk): BatchNorm running-mean/var (momentum) buffers are not updated here;
    # only the train-mode forward (batch statistics) is reproduced, matching prior scope.

    @jax.jit
    def run(x, params):
        return fc_forward(x, params, activations)

    out = jax.block_until_ready(run(x, params))

    ref = fc_reference(x, params, activations)
    assert out.shape == (B, T, N, units[-1])
    assert jnp.allclose(out, ref, atol=1e-4, rtol=1e-4), "mismatch vs reference"

    print("KERNEL_OK")
</pallas_src>

<mosaic_0001>
module attributes {stable_mosaic.version = 11 : i64} {
  func.func @fc_fused_kernel(%arg0: i32, %arg1: i32, %arg2: memref<4x256xf32, #tpu.memory_space<vmem>>, %arg3: memref<32x4xf32, #tpu.memory_space<vmem>>, %arg4: memref<32x1xf32, #tpu.memory_space<vmem>>, %arg5: memref<32x1xf32, #tpu.memory_space<vmem>>, %arg6: memref<32x1xf32, #tpu.memory_space<vmem>>, %arg7: memref<32x256xf32, #tpu.memory_space<vmem>>, %arg8: memref<32x256xf32, #tpu.memory_space<vmem>>, %arg9: memref<32x1xf32, #tpu.memory_space<vmem>>, %arg10: memref<32x1xf32, #tpu.memory_space<vmem>>) attributes {dimension_semantics = [#tpu.dimension_semantics<arbitrary>, #tpu.dimension_semantics<arbitrary>], iteration_bounds = array<i64: 3, 1>, scalar_prefetch = 0 : i64, scratch_operands = 3 : i64, tpu.core_type = #tpu.core_type<tc>, window_params = [{transform_indices = @transform_0, window_bounds = array<i64: 4, 256>}, {pipeline_mode = #tpu.pipeline_mode<synchronous>, transform_indices = @transform_1, window_bounds = array<i64: 32, 4>}, {pipeline_mode = #tpu.pipeline_mode<synchronous>, transform_indices = @transform_2, window_bounds = array<i64: 32, 1>}, {pipeline_mode = #tpu.pipeline_mode<synchronous>, transform_indices = @transform_3, window_bounds = array<i64: 32, 1>}, {pipeline_mode = #tpu.pipeline_mode<synchronous>, transform_indices = @transform_4, window_bounds = array<i64: 32, 1>}, {transform_indices = @transform_5, window_bounds = array<i64: 32, 256>}]} {
    %c256_i32 = arith.constant 256 : i32
    %0 = arith.muli %arg1, %c256_i32 : i32
    %1 = tpu.assume_multiple %0, 256 : i32
    %c0_i32 = arith.constant 0 : i32
    %2 = arith.cmpi eq, %arg0, %c0_i32 : i32
    %3 = arith.extui %2 : i1 to i32
    %c0_i32_0 = arith.constant 0 : i32
    %4 = arith.cmpi ne, %3, %c0_i32_0 : i32
    scf.if %4 {
      %c0_i32_3 = arith.constant 0 : i32
      %11 = arith.cmpi eq, %arg1, %c0_i32_3 : i32
      %12 = arith.extui %11 : i1 to i32
      %c0_i32_4 = arith.constant 0 : i32
      %13 = arith.cmpi ne, %12, %c0_i32_4 : i32
      scf.if %13 {
        %cst_18 = arith.constant 0.000000e+00 : f32
        %48 = vector.broadcast %cst_18 : f32 to vector<32x1xf32>
        %c0_19 = arith.constant 0 : index
        %c0_20 = arith.constant 0 : index
        %49 = vector.load %arg9[%c0_19, %c0_20] : memref<32x1xf32, #tpu.memory_space<vmem>>, vector<32x1xf32>
        tpu.vector_store %arg9[%c0_19, %c0_20], %48 {strides = array<i32>} : memref<32x1xf32, #tpu.memory_space<vmem>>, vector<32x1xf32>,
        %cst_21 = arith.constant 0.000000e+00 : f32
        %50 = vector.broadcast %cst_21 : f32 to vector<32x1xf32>
        %c0_22 = arith.constant 0 : index
        %c0_23 = arith.constant 0 : index
        %51 = vector.load %arg10[%c0_22, %c0_23] : memref<32x1xf32, #tpu.memory_space<vmem>>, vector<32x1xf32>
        tpu.vector_store %arg10[%c0_22, %c0_23], %50 {strides = array<i32>} : memref<32x1xf32, #tpu.memory_space<vmem>>, vector<32x1xf32>,
      } else {
      }
      %c0 = arith.constant 0 : index
      %c0_5 = arith.constant 0 : index
      %14 = vector.load %arg2[%c0, %c0_5] : memref<4x256xf32, #tpu.memory_space<vmem>>, vector<4x256xf32>
      %c0_6 = arith.constant 0 : index
      %c0_7 = arith.constant 0 : index
      %15 = vector.load %arg3[%c0_6, %c0_7] : memref<32x4xf32, #tpu.memory_space<vmem>>, vector<32x1xf32>
      %16 = vector.extract_strided_slice %14 {offsets = [0, 0], sizes = [1, 256], strides = [1, 1]} : vector<4x256xf32> to vector<1x256xf32>
      %17 = vector.broadcast %15 : vector<32x1xf32> to vector<32x256xf32>
      %18 = vector.broadcast %16 : vector<1x256xf32> to vector<32x256xf32>
      %19 = arith.mulf %17, %18 : vector<32x256xf32>
      %c0_8 = arith.constant 0 : index
      %c1 = arith.constant 1 : index
      %20 = vector.load %arg3[%c0_8, %c1] : memref<32x4xf32, #tpu.memory_space<vmem>>, vector<32x1xf32>
      %21 = vector.extract_strided_slice %14 {offsets = [1, 0], sizes = [1, 256], strides = [1, 1]} : vector<4x256xf32> to vector<1x256xf32>
      %22 = vector.broadcast %20 : vector<32x1xf32> to vector<32x256xf32>
      %23 = vector.broadcast %21 : vector<1x256xf32> to vector<32x256xf32>
      %24 = arith.mulf %22, %23 : vector<32x256xf32>
      %25 = arith.addf %19, %24 : vector<32x256xf32>
      %c0_9 = arith.constant 0 : index
      %c2 = arith.constant 2 : index
      %26 = vector.load %arg3[%c0_9, %c2] : memref<32x4xf32, #tpu.memory_space<vmem>>, vector<32x1xf32>
      %27 = vector.extract_strided_slice %14 {offsets = [2, 0], sizes = [1, 256], strides = [1, 1]} : vector<4x256xf32> to vector<1x256xf32>
      %28 = vector.broadcast %26 : vector<32x1xf32> to vector<32x256xf32>
      %29 = vector.broadcast %27 : vector<1x256xf32> to vector<32x256xf32>
      %30 = arith.mulf %28, %29 : vector<32x256xf32>
      %31 = arith.addf %25, %30 : vector<32x256xf32>
      %c0_10 = arith.constant 0 : index
      %c3 = arith.constant 3 : index
      %32 = vector.load %arg3[%c0_10, %c3] : memref<32x4xf32, #tpu.memory_space<vmem>>, vector<32x1xf32>
      %33 = vector.extract_strided_slice %14 {offsets = [3, 0], sizes = [1, 256], strides = [1, 1]} : vector<4x256xf32> to vector<1x256xf32>
      %34 = vector.broadcast %32 : vector<32x1xf32> to vector<32x256xf32>
      %35 = vector.broadcast %33 : vector<1x256xf32> to vector<32x256xf32>
      %36 = arith.mulf %34, %35 : vector<32x256xf32>
      %37 = arith.addf %31, %36 : vector<32x256xf32>
      %c0_11 = arith.constant 0 : index
      %c0_12 = arith.constant 0 : index
      %38 = vector.load %arg4[%c0_11, %c0_12] : memref<32x1xf32, #tpu.memory_space<vmem>>, vector<32x1xf32>
      %39 = vector.broadcast %38 : vector<32x1xf32> to vector<32x256xf32>
      %40 = arith.addf %37, %39 : vector<32x256xf32>
      %c0_13 = arith.constant 0 : index
      %41 = arith.index_cast %1 : i32 to index
      %42 = vector.load %arg8[%c0_13, %41] : memref<32x256xf32, #tpu.memory_space<vmem>>, vector<32x256xf32>
      tpu.vector_store %arg8[%c0_13, %41], %40 {strides = array<i32>} : memref<32x256xf32, #tpu.memory_space<vmem>>, vector<32x256xf32>,
      %c0_14 = arith.constant 0 : index
      %c0_15 = arith.constant 0 : index
      %43 = vector.load %arg9[%c0_14, %c0_15] : memref<32x1xf32, #tpu.memory_space<vmem>>, vector<32x1xf32>
      %cst = arith.constant dense<0.000000e+00> : vector<32xf32>
      %44 = vector.multi_reduction <add>, %40, %cst [1] : vector<32x256xf32> to vector<32xf32>
      %45 = vector.shape_cast %44 : vector<32xf32> to vector<32x1xf32>
      %46 = arith.addf %43, %45 : vector<32x1xf32>
      %c0_16 = arith.constant 0 : index
      %c0_17 = arith.constant 0 : index
      %47 = vector.load %arg9[%c0_16, %c0_17] : memref<32x1xf32, #tpu.memory_space<vmem>>, vector<32x1xf32>
      tpu.vector_store %arg9[%c0_16, %c0_17], %46 {strides = array<i32>} : memref<32x1xf32, #tpu.memory_space<vmem>>, vector<32x1xf32>,
    } else {
    }
    %c1_i32 = arith.constant 1 : i32
    %5 = arith.cmpi eq, %arg0, %c1_i32 : i32
    %6 = arith.extui %5 : i1 to i32
    %c0_i32_1 = arith.constant 0 : i32
    %7 = arith.cmpi ne, %6, %c0_i32_1 : i32
    scf.if %7 {
      %c0 = arith.constant 0 : index
      %c0_3 = arith.constant 0 : index
      %11 = vector.load %arg9[%c0, %c0_3] : memref<32x1xf32, #tpu.memory_space<vmem>>, vector<32x1xf32>
      %cst = arith.constant 3.906250e-03 : f32
      %12 = vector.broadcast %cst : f32 to vector<32x1xf32>
      %13 = arith.mulf %11, %12 : vector<32x1xf32>
      %c0_4 = arith.constant 0 : index
      %14 = arith.index_cast %1 : i32 to index
      %15 = vector.load %arg8[%c0_4, %14] : memref<32x256xf32, #tpu.memory_space<vmem>>, vector<32x256xf32>
      %16 = vector.broadcast %13 : vector<32x1xf32> to vector<32x256xf32>
      %17 = arith.subf %15, %16 : vector<32x256xf32>
      %c0_5 = arith.constant 0 : index
      %c0_6 = arith.constant 0 : index
      %18 = vector.load %arg10[%c0_5, %c0_6] : memref<32x1xf32, #tpu.memory_space<vmem>>, vector<32x1xf32>
      %19 = arith.mulf %17, %17 : vector<32x256xf32>
      %cst_7 = arith.constant dense<0.000000e+00> : vector<32xf32>
      %20 = vector.multi_reduction <add>, %19, %cst_7 [1] : vector<32x256xf32> to vector<32xf32>
      %21 = vector.shape_cast %20 : vector<32xf32> to vector<32x1xf32>
      %22 = arith.addf %18, %21 : vector<32x1xf32>
      %c0_8 = arith.constant 0 : index
      %c0_9 = arith.constant 0 : index
      %23 = vector.load %arg10[%c0_8, %c0_9] : memref<32x1xf32, #tpu.memory_space<vmem>>, vector<32x1xf32>
      tpu.vector_store %arg10[%c0_8, %c0_9], %22 {strides = array<i32>} : memref<32x1xf32, #tpu.memory_space<vmem>>, vector<32x1xf32>,
    } else {
    }
    %c2_i32 = arith.constant 2 : i32
    %8 = arith.cmpi eq, %arg0, %c2_i32 : i32
    %9 = arith.extui %8 : i1 to i32
    %c0_i32_2 = arith.constant 0 : i32
    %10 = arith.cmpi ne, %9, %c0_i32_2 : i32
    scf.if %10 {
      %c0 = arith.constant 0 : index
      %c0_3 = arith.constant 0 : index
      %11 = vector.load %arg9[%c0, %c0_3] : memref<32x1xf32, #tpu.memory_space<vmem>>, vector<32x1xf32>
      %cst = arith.constant 3.906250e-03 : f32
      %12 = vector.broadcast %cst : f32 to vector<32x1xf32>
      %13 = arith.mulf %11, %12 : vector<32x1xf32>
      %c0_4 = arith.constant 0 : index
      %c0_5 = arith.constant 0 : index
      %14 = vector.load %arg10[%c0_4, %c0_5] : memref<32x1xf32, #tpu.memory_space<vmem>>, vector<32x1xf32>
      %cst_6 = arith.constant 3.906250e-03 : f32
      %15 = vector.broadcast %cst_6 : f32 to vector<32x1xf32>
      %16 = arith.mulf %14, %15 : vector<32x1xf32>
      %cst_7 = arith.constant 9.99999974E-6 : f32
      %17 = vector.broadcast %cst_7 : f32 to vector<32x1xf32>
      %18 = arith.addf %16, %17 : vector<32x1xf32>
      %19 = math.rsqrt %18 : vector<32x1xf32>
      %c0_8 = arith.constant 0 : index
      %c0_9 = arith.constant 0 : index
      %20 = vector.load %arg5[%c0_8, %c0_9] : memref<32x1xf32, #tpu.memory_space<vmem>>, vector<32x1xf32>
      %21 = arith.mulf %19, %20 : vector<32x1xf32>
      %c0_10 = arith.constant 0 : index
      %22 = arith.index_cast %1 : i32 to index
      %23 = vector.load %arg8[%c0_10, %22] : memref<32x256xf32, #tpu.memory_space<vmem>>, vector<32x256xf32>
      %24 = vector.broadcast %13 : vector<32x1xf32> to vector<32x256xf32>
      %25 = arith.subf %23, %24 : vector<32x256xf32>
      %26 = vector.broadcast %21 : vector<32x1xf32> to vector<32x256xf32>
      %27 = arith.mulf %25, %26 : vector<32x256xf32>
      %c0_11 = arith.constant 0 : index
      %c0_12 = arith.constant 0 : index
      %28 = vector.load %arg6[%c0_11, %c0_12] : memref<32x1xf32, #tpu.memory_space<vmem>>, vector<32x1xf32>
      %29 = vector.broadcast %28 : vector<32x1xf32> to vector<32x256xf32>
      %30 = arith.addf %27, %29 : vector<32x256xf32>
      %cst_13 = arith.constant 0.000000e+00 : f32
      %31 = vector.broadcast %cst_13 : f32 to vector<32x256xf32>
      %32 = arith.maximumf %30, %31 : vector<32x256xf32>
      %c0_14 = arith.constant 0 : index
      %c0_15 = arith.constant 0 : index
      %33 = vector.load %arg7[%c0_14, %c0_15] : memref<32x256xf32, #tpu.memory_space<vmem>>, vector<32x256xf32>
      tpu.vector_store %arg7[%c0_14, %c0_15], %32 {strides = array<i32>} : memref<32x256xf32, #tpu.memory_space<vmem>>, vector<32x256xf32>,
    } else {
    }
    return
  }
  func.func @transform_0(%arg0: i32, %arg1: i32) -> (i32, i32) {
    %c0_i32 = arith.constant 0 : i32
    %0 = arith.cmpi eq, %arg0, %c0_i32 : i32
    %c0_i32_0 = arith.constant 0 : i32
    %1 = arith.select %0, %arg1, %c0_i32_0 : i32
    %c0_i32_1 = arith.constant 0 : i32
    %c0_i32_2 = arith.constant 0 : i32
    return %c0_i32_1, %1 : i32, i32
  }
  func.func @transform_1(%arg0: i32, %arg1: i32) -> (i32, i32) {
    %c0_i32 = arith.constant 0 : i32
    %c0_i32_0 = arith.constant 0 : i32
    %c0_i32_1 = arith.constant 0 : i32
    return %c0_i32, %c0_i32_0 : i32, i32
  }
  func.func @transform_2(%arg0: i32, %arg1: i32) -> (i32, i32) {
    %c0_i32 = arith.constant 0 : i32
    %c0_i32_0 = arith.constant 0 : i32
    %c0_i32_1 = arith.constant 0 : i32
    return %c0_i32, %c0_i32_0 : i32, i32
  }
  func.func @transform_3(%arg0: i32, %arg1: i32) -> (i32, i32) {
    %c0_i32 = arith.constant 0 : i32
    %c0_i32_0 = arith.constant 0 : i32
    %c0_i32_1 = arith.constant 0 : i32
    return %c0_i32, %c0_i32_0 : i32, i32
  }
  func.func @transform_4(%arg0: i32, %arg1: i32) -> (i32, i32) {
    %c0_i32 = arith.constant 0 : i32
    %c0_i32_0 = arith.constant 0 : i32
    %c0_i32_1 = arith.constant 0 : i32
    return %c0_i32, %c0_i32_0 : i32, i32
  }
  func.func @transform_5(%arg0: i32, %arg1: i32) -> (i32, i32) {
    %c2_i32 = arith.constant 2 : i32
    %0 = arith.cmpi eq, %arg0, %c2_i32 : i32
    %c0_i32 = arith.constant 0 : i32
    %1 = arith.select %0, %arg1, %c0_i32 : i32
    %c0_i32_0 = arith.constant 0 : i32
    %c0_i32_1 = arith.constant 0 : i32
    return %c0_i32_0, %1 : i32, i32
  }
}

module attributes {stable_mosaic.version = 11 : i64} {
  func.func @fc_fused_kernel(%arg0: i32, %arg1: i32, %arg2: memref<32x256xf32, #tpu.memory_space<vmem>>, %arg3: memref<32x32xf32, #tpu.memory_space<vmem>>, %arg4: memref<32x1xf32, #tpu.memory_space<vmem>>, %arg5: memref<32x1xf32, #tpu.memory_space<vmem>>, %arg6: memref<32x1xf32, #tpu.memory_space<vmem>>, %arg7: memref<32x256xf32, #tpu.memory_space<vmem>>, %arg8: memref<32x256xf32, #tpu.memory_space<vmem>>, %arg9: memref<32x1xf32, #tpu.memory_space<vmem>>, %arg10: memref<32x1xf32, #tpu.memory_space<vmem>>) attributes {dimension_semantics = [#tpu.dimension_semantics<arbitrary>, #tpu.dimension_semantics<arbitrary>], iteration_bounds = array<i64: 3, 1>, scalar_prefetch = 0 : i64, scratch_operands = 3 : i64, tpu.core_type = #tpu.core_type<tc>, window_params = [{transform_indices = @transform_0, window_bounds = array<i64: 32, 256>}, {pipeline_mode = #tpu.pipeline_mode<synchronous>, transform_indices = @transform_1, window_bounds = array<i64: 32, 32>}, {pipeline_mode = #tpu.pipeline_mode<synchronous>, transform_indices = @transform_2, window_bounds = array<i64: 32, 1>}, {pipeline_mode = #tpu.pipeline_mode<synchronous>, transform_indices = @transform_3, window_bounds = array<i64: 32, 1>}, {pipeline_mode = #tpu.pipeline_mode<synchronous>, transform_indices = @transform_4, window_bounds = array<i64: 32, 1>}, {transform_indices = @transform_5, window_bounds = array<i64: 32, 256>}]} {
    %c256_i32 = arith.constant 256 : i32
    %0 = arith.muli %arg1, %c256_i32 : i32
    %1 = tpu.assume_multiple %0, 256 : i32
    %c0_i32 = arith.constant 0 : i32
    %2 = arith.cmpi eq, %arg0, %c0_i32 : i32
    %3 = arith.extui %2 : i1 to i32
    %c0_i32_0 = arith.constant 0 : i32
    %4 = arith.cmpi ne, %3, %c0_i32_0 : i32
    scf.if %4 {
      %c0_i32_3 = arith.constant 0 : i32
      %11 = arith.cmpi eq, %arg1, %c0_i32_3 : i32
      %12 = arith.extui %11 : i1 to i32
      %c0_i32_4 = arith.constant 0 : i32
      %13 = arith.cmpi ne, %12, %c0_i32_4 : i32
      scf.if %13 {
        %cst_16 = arith.constant 0.000000e+00 : f32
        %27 = vector.broadcast %cst_16 : f32 to vector<32x1xf32>
        %c0_17 = arith.constant 0 : index
        %c0_18 = arith.constant 0 : index
        %28 = vector.load %arg9[%c0_17, %c0_18] : memref<32x1xf32, #tpu.memory_space<vmem>>, vector<32x1xf32>
        tpu.vector_store %arg9[%c0_17, %c0_18], %27 {strides = array<i32>} : memref<32x1xf32, #tpu.memory_space<vmem>>, vector<32x1xf32>,
        %cst_19 = arith.constant 0.000000e+00 : f32
        %29 = vector.broadcast %cst_19 : f32 to vector<32x1xf32>
        %c0_20 = arith.constant 0 : index
        %c0_21 = arith.constant 0 : index
        %30 = vector.load %arg10[%c0_20, %c0_21] : memref<32x1xf32, #tpu.memory_space<vmem>>, vector<32x1xf32>
        tpu.vector_store %arg10[%c0_20, %c0_21], %29 {strides = array<i32>} : memref<32x1xf32, #tpu.memory_space<vmem>>, vector<32x1xf32>,
      } else {
      }
      %c0 = arith.constant 0 : index
      %c0_5 = arith.constant 0 : index
      %14 = vector.load %arg2[%c0, %c0_5] : memref<32x256xf32, #tpu.memory_space<vmem>>, vector<32x256xf32>
      %c0_6 = arith.constant 0 : index
      %c0_7 = arith.constant 0 : index
      %15 = vector.load %arg3[%c0_6, %c0_7] : memref<32x32xf32, #tpu.memory_space<vmem>>, vector<32x32xf32>
      %cst = arith.constant dense<0.000000e+00> : vector<32x256xf32>
      %16 = tpu.matmul %15, %14, %cst {dimension_numbers = #tpu.dot_dimension_numbers<[1], [0], [0], [1], [0, 0, 1, 1], [], []>} : vector<32x32xf32>, vector<32x256xf32>, vector<32x256xf32> -> vector<32x256xf32>
      %c0_8 = arith.constant 0 : index
      %c0_9 = arith.constant 0 : index
      %17 = vector.load %arg4[%c0_8, %c0_9] : memref<32x1xf32, #tpu.memory_space<vmem>>, vector<32x1xf32>
      %18 = vector.broadcast %17 : vector<32x1xf32> to vector<32x256xf32>
      %19 = arith.addf %16, %18 : vector<32x256xf32>
      %c0_10 = arith.constant 0 : index
      %20 = arith.index_cast %1 : i32 to index
      %21 = vector.load %arg8[%c0_10, %20] : memref<32x256xf32, #tpu.memory_space<vmem>>, vector<32x256xf32>
      tpu.vector_store %arg8[%c0_10, %20], %19 {strides = array<i32>} : memref<32x256xf32, #tpu.memory_space<vmem>>, vector<32x256xf32>,
      %c0_11 = arith.constant 0 : index
      %c0_12 = arith.constant 0 : index
      %22 = vector.load %arg9[%c0_11, %c0_12] : memref<32x1xf32, #tpu.memory_space<vmem>>, vector<32x1xf32>
      %cst_13 = arith.constant dense<0.000000e+00> : vector<32xf32>
      %23 = vector.multi_reduction <add>, %19, %cst_13 [1] : vector<32x256xf32> to vector<32xf32>
      %24 = vector.shape_cast %23 : vector<32xf32> to vector<32x1xf32>
      %25 = arith.addf %22, %24 : vector<32x1xf32>
      %c0_14 = arith.constant 0 : index
      %c0_15 = arith.constant 0 : index
      %26 = vector.load %arg9[%c0_14, %c0_15] : memref<32x1xf32, #tpu.memory_space<vmem>>, vector<32x1xf32>
      tpu.vector_store %arg9[%c0_14, %c0_15], %25 {strides = array<i32>} : memref<32x1xf32, #tpu.memory_space<vmem>>, vector<32x1xf32>,
    } else {
    }
    %c1_i32 = arith.constant 1 : i32
    %5 = arith.cmpi eq, %arg0, %c1_i32 : i32
    %6 = arith.extui %5 : i1 to i32
    %c0_i32_1 = arith.constant 0 : i32
    %7 = arith.cmpi ne, %6, %c0_i32_1 : i32
    scf.if %7 {
      %c0 = arith.constant 0 : index
      %c0_3 = arith.constant 0 : index
      %11 = vector.load %arg9[%c0, %c0_3] : memref<32x1xf32, #tpu.memory_space<vmem>>, vector<32x1xf32>
      %cst = arith.constant 3.906250e-03 : f32
      %12 = vector.broadcast %cst : f32 to vector<32x1xf32>
      %13 = arith.mulf %11, %12 : vector<32x1xf32>
      %c0_4 = arith.constant 0 : index
      %14 = arith.index_cast %1 : i32 to index
      %15 = vector.load %arg8[%c0_4, %14] : memref<32x256xf32, #tpu.memory_space<vmem>>, vector<32x256xf32>
      %16 = vector.broadcast %13 : vector<32x1xf32> to vector<32x256xf32>
      %17 = arith.subf %15, %16 : vector<32x256xf32>
      %c0_5 = arith.constant 0 : index
      %c0_6 = arith.constant 0 : index
      %18 = vector.load %arg10[%c0_5, %c0_6] : memref<32x1xf32, #tpu.memory_space<vmem>>, vector<32x1xf32>
      %19 = arith.mulf %17, %17 : vector<32x256xf32>
      %cst_7 = arith.constant dense<0.000000e+00> : vector<32xf32>
      %20 = vector.multi_reduction <add>, %19, %cst_7 [1] : vector<32x256xf32> to vector<32xf32>
      %21 = vector.shape_cast %20 : vector<32xf32> to vector<32x1xf32>
      %22 = arith.addf %18, %21 : vector<32x1xf32>
      %c0_8 = arith.constant 0 : index
      %c0_9 = arith.constant 0 : index
      %23 = vector.load %arg10[%c0_8, %c0_9] : memref<32x1xf32, #tpu.memory_space<vmem>>, vector<32x1xf32>
      tpu.vector_store %arg10[%c0_8, %c0_9], %22 {strides = array<i32>} : memref<32x1xf32, #tpu.memory_space<vmem>>, vector<32x1xf32>,
    } else {
    }
    %c2_i32 = arith.constant 2 : i32
    %8 = arith.cmpi eq, %arg0, %c2_i32 : i32
    %9 = arith.extui %8 : i1 to i32
    %c0_i32_2 = arith.constant 0 : i32
    %10 = arith.cmpi ne, %9, %c0_i32_2 : i32
    scf.if %10 {
      %c0 = arith.constant 0 : index
      %c0_3 = arith.constant 0 : index
      %11 = vector.load %arg9[%c0, %c0_3] : memref<32x1xf32, #tpu.memory_space<vmem>>, vector<32x1xf32>
      %cst = arith.constant 3.906250e-03 : f32
      %12 = vector.broadcast %cst : f32 to vector<32x1xf32>
      %13 = arith.mulf %11, %12 : vector<32x1xf32>
      %c0_4 = arith.constant 0 : index
      %c0_5 = arith.constant 0 : index
      %14 = vector.load %arg10[%c0_4, %c0_5] : memref<32x1xf32, #tpu.memory_space<vmem>>, vector<32x1xf32>
      %cst_6 = arith.constant 3.906250e-03 : f32
      %15 = vector.broadcast %cst_6 : f32 to vector<32x1xf32>
      %16 = arith.mulf %14, %15 : vector<32x1xf32>
      %cst_7 = arith.constant 9.99999974E-6 : f32
      %17 = vector.broadcast %cst_7 : f32 to vector<32x1xf32>
      %18 = arith.addf %16, %17 : vector<32x1xf32>
      %19 = math.rsqrt %18 : vector<32x1xf32>
      %c0_8 = arith.constant 0 : index
      %c0_9 = arith.constant 0 : index
      %20 = vector.load %arg5[%c0_8, %c0_9] : memref<32x1xf32, #tpu.memory_space<vmem>>, vector<32x1xf32>
      %21 = arith.mulf %19, %20 : vector<32x1xf32>
      %c0_10 = arith.constant 0 : index
      %22 = arith.index_cast %1 : i32 to index
      %23 = vector.load %arg8[%c0_10, %22] : memref<32x256xf32, #tpu.memory_space<vmem>>, vector<32x256xf32>
      %24 = vector.broadcast %13 : vector<32x1xf32> to vector<32x256xf32>
      %25 = arith.subf %23, %24 : vector<32x256xf32>
      %26 = vector.broadcast %21 : vector<32x1xf32> to vector<32x256xf32>
      %27 = arith.mulf %25, %26 : vector<32x256xf32>
      %c0_11 = arith.constant 0 : index
      %c0_12 = arith.constant 0 : index
      %28 = vector.load %arg6[%c0_11, %c0_12] : memref<32x1xf32, #tpu.memory_space<vmem>>, vector<32x1xf32>
      %29 = vector.broadcast %28 : vector<32x1xf32> to vector<32x256xf32>
      %30 = arith.addf %27, %29 : vector<32x256xf32>
      %c0_13 = arith.constant 0 : index
      %c0_14 = arith.constant 0 : index
      %31 = vector.load %arg7[%c0_13, %c0_14] : memref<32x256xf32, #tpu.memory_space<vmem>>, vector<32x256xf32>
      tpu.vector_store %arg7[%c0_13, %c0_14], %30 {strides = array<i32>} : memref<32x256xf32, #tpu.memory_space<vmem>>, vector<32x256xf32>,
    } else {
    }
    return
  }
  func.func @transform_0(%arg0: i32, %arg1: i32) -> (i32, i32) {
    %c0_i32 = arith.constant 0 : i32
    %0 = arith.cmpi eq, %arg0, %c0_i32 : i32
    %c0_i32_0 = arith.constant 0 : i32
    %1 = arith.select %0, %arg1, %c0_i32_0 : i32
    %c0_i32_1 = arith.constant 0 : i32
    %c0_i32_2 = arith.constant 0 : i32
    return %c0_i32_1, %1 : i32, i32
  }
  func.func @transform_1(%arg0: i32, %arg1: i32) -> (i32, i32) {
    %c0_i32 = arith.constant 0 : i32
    %c0_i32_0 = arith.constant 0 : i32
    %c0_i32_1 = arith.constant 0 : i32
    return %c0_i32, %c0_i32_0 : i32, i32
  }
  func.func @transform_2(%arg0: i32, %arg1: i32) -> (i32, i32) {
    %c0_i32 = arith.constant 0 : i32
    %c0_i32_0 = arith.constant 0 : i32
    %c0_i32_1 = arith.constant 0 : i32
    return %c0_i32, %c0_i32_0 : i32, i32
  }
  func.func @transform_3(%arg0: i32, %arg1: i32) -> (i32, i32) {
    %c0_i32 = arith.constant 0 : i32
    %c0_i32_0 = arith.constant 0 : i32
    %c0_i32_1 = arith.constant 0 : i32
    return %c0_i32, %c0_i32_0 : i32, i32
  }
  func.func @transform_4(%arg0: i32, %arg1: i32) -> (i32, i32) {
    %c0_i32 = arith.constant 0 : i32
    %c0_i32_0 = arith.constant 0 : i32
    %c0_i32_1 = arith.constant 0 : i32
    return %c0_i32, %c0_i32_0 : i32, i32
  }
  func.func @transform_5(%arg0: i32, %arg1: i32) -> (i32, i32) {
    %c2_i32 = arith.constant 2 : i32
    %0 = arith.cmpi eq, %arg0, %c2_i32 : i32
    %c0_i32 = arith.constant 0 : i32
    %1 = arith.select %0, %arg1, %c0_i32 : i32
    %c0_i32_0 = arith.constant 0 : i32
    %c0_i32_1 = arith.constant 0 : i32
    return %c0_i32_0, %1 : i32, i32
  }
}

</mosaic_0001>

<llo_original>
// kernel: run.2
$region0: #{run.2}
  #allocation0 [shape = 'u32[]', space=smem, size = 0x4, offset = 0x4, fixed_abs, tag = 'smem constant byte address 0x4 - core index']
  #allocation1 [shape = 'u32[72,128]{1,0:T(1,128)}', space=vmem, size = 0x9000, scoped, tag = 'internal scratch']
  #allocation2 [shape = 'f32[32,256]{1,0:T(8,128)}', space=vmem, size = 0x8000, scoped, tag = 'scratch operand']
  #allocation3 [shape = 'f32[32,1]{1,0:T(8,128)}', space=vmem, size = 0x4000, scoped, tag = 'scratch operand']
  #allocation4 [shape = 'f32[32,1]{1,0:T(8,128)}', space=vmem, size = 0x4000, scoped, tag = 'scratch operand']
  %s0 = inlined_call_operand.vmem [shape: f32[4,256], index: 0, kind: input, shape index: {}]
  %s1 = inlined_call_operand.vmem [shape: f32[32,4], index: 1, kind: input, shape index: {}]
  %s2 = inlined_call_operand.vmem [shape: f32[32,1], index: 2, kind: input, shape index: {}]
  %s3 = inlined_call_operand.vmem [shape: f32[32,1], index: 3, kind: input, shape index: {}]
  %s4 = inlined_call_operand.vmem [shape: f32[32,1], index: 4, kind: input, shape index: {}]
  %s5 = inlined_call_operand.vmem [shape: f32[32,256], index: 5, kind: output, shape index: {}]
  %s6 = sld [smem:[#allocation0]]
  $region69: #{run.2} parent=0
    _
  %s8 = ssub.s32 1, %s6
  %s9 = scalar_select 0, %s8, %s6
  loop: start=0, step=1, limit=5
  $region2: #{run.2} parent=0 // loop_pre_header
    _
  $region3: #{run.2} parent=0 // loop_header
    %s11 = sphi 0, %s15
    %p12 = scmp.ge.s32.totalorder %s11, 5
    %s18 = sphi 0, %s30
    %s19 = sphi 0, %s26
    %s20 = sphi 0, %s18
    %s21 = sphi 0, %s19
    %s22 = sphi 0, %s20
    %s23 = sphi 0, %s21
    %s37 = sphi 0, %s39
    %s40 = sphi 0, %s37
    %s41 = sphi 0, %s40
    %s57 = sphi 0, %s41
    %s61 = sphi 0, %s61
    %s63 = sphi 0, %s61
    %s64 = sphi 0, %s63
    %s78 = sphi 0, %s64
    %s82 = sphi 0, %s82
    %s84 = sphi 0, %s82
    %s85 = sphi 0, %s84
    %s99 = sphi 0, %s85
    %s103 = sphi 0, %s103
    %s105 = sphi 0, %s103
    %s106 = sphi 0, %s105
    %s120 = sphi 0, %s106
    %s124 = sphi 0, %s124
    %s126 = sphi 0, %s124
    %s127 = sphi 0, %s126
    %s141 = sphi 0, %s127
    %s151 = sphi 0, %s153
    %s154 = sphi 0, %s151
    %s155 = sphi 0, %s154
    %s171 = sphi 0, %s155
  $region4: #{run.2} parent=0 // loop_header_branch
    %14 = sbr.rel (%p12) target = $region8
  $region5: #{run.2} parent=0 // loop_body
    %s16 = ssub.s32 %s11, 1
    %s17 = ssub.s32 %s11, 2
    %s24 = sadd.s32 1, %s19
    %p25 = scmp.ge.s32.totalorder %s24, 1
    %s26 = scalar_select %p25, 0, %s24
    %s27 = sadd.s32 1, %s18
    %s28 = scalar_select %p25, %s27, %s18
    %p29 = scmp.ge.s32.totalorder %s28, 3
    %s30 = scalar_select %p29, 0, %s28
    %p31 = scmp.eq.s32.totalorder %s18, 0
    %s32 = scalar_select %p31, %s19, 0
    %p33 = scmp.eq.s32.totalorder %s30, 0
    %s34 = scalar_select %p33, %s26, 0
    %s35 = ssub.s32 %s32, %s34
    %p36 = scmp.eq.s32.totalorder %s35, 0
    %s38 = sadd.s32 %s37, 1
    %s39 = scalar_select %p36, %s37, %s38
    %p42 = pneg %p36
    %p43 = scmp.eq.s32.totalorder %s11, 2
    %p44 = por %p42, %p43
    %p45 = scmp.ne.s32.totalorder %s37, %s40
    %p46 = scmp.eq.s32.totalorder %s11, 0
    %p47 = por %p45, %p46
    %p48 = scmp.ne.s32.totalorder %s37, %s40
    %p49 = scmp.eq.s32.totalorder %s16, 2
    %p50 = por %p48, %p49
    %p51 = scmp.ne.s32.totalorder %s40, %s41
    %p52 = scmp.eq.s32.totalorder %s16, 0
    %p53 = por %p51, %p52
    %p54 = scmp.ne.s32.totalorder %s40, %s41
    %p55 = scmp.eq.s32.totalorder %s17, 2
    %p56 = por %p54, %p55
    %p58 = scmp.ne.s32.totalorder %s41, %s57
    %p59 = scmp.eq.s32.totalorder %s17, 0
    %p60 = por %p58, %p59
    %s62 = sadd.s32 %s61, 1
    %p65 = scmp.eq.s32.totalorder %s11, 2
    %p66 = scmp.ne.s32.totalorder %s61, %s63
    %p67 = scmp.eq.s32.totalorder %s11, 0
    %p68 = por %p66, %p67
    %p69 = scmp.ne.s32.totalorder %s61, %s63
    %p70 = scmp.eq.s32.totalorder %s16, 2
    %p71 = por %p69, %p70
    %p72 = scmp.ne.s32.totalorder %s63, %s64
    %p73 = scmp.eq.s32.totalorder %s16, 0
    %p74 = por %p72, %p73
    %p75 = scmp.ne.s32.totalorder %s63, %s64
    %p76 = scmp.eq.s32.totalorder %s17, 2
    %p77 = por %p75, %p76
    %p79 = scmp.ne.s32.totalorder %s64, %s78
    %p80 = scmp.eq.s32.totalorder %s17, 0
    %p81 = por %p79, %p80
    %s83 = sadd.s32 %s82, 1
    %p86 = scmp.eq.s32.totalorder %s11, 2
    %p87 = scmp.ne.s32.totalorder %s82, %s84
    %p88 = scmp.eq.s32.totalorder %s11, 0
    %p89 = por %p87, %p88
    %p90 = scmp.ne.s32.totalorder %s82, %s84
    %p91 = scmp.eq.s32.totalorder %s16, 2
    %p92 = por %p90, %p91
    %p93 = scmp.ne.s32.totalorder %s84, %s85
    %p94 = scmp.eq.s32.totalorder %s16, 0
    %p95 = por %p93, %p94
    %p96 = scmp.ne.s32.totalorder %s84, %s85
    %p97 = scmp.eq.s32.totalorder %s17, 2
    %p98 = por %p96, %p97
    %p100 = scmp.ne.s32.totalorder %s85, %s99
    %p101 = scmp.eq.s32.totalorder %s17, 0
    %p102 = por %p100, %p101
    %s104 = sadd.s32 %s103, 1
    %p107 = scmp.eq.s32.totalorder %s11, 2
    %p108 = scmp.ne.s32.totalorder %s103, %s105
    %p109 = scmp.eq.s32.totalorder %s11, 0
    %p110 = por %p108, %p109
    %p111 = scmp.ne.s32.totalorder %s103, %s105
    %p112 = scmp.eq.s32.totalorder %s16, 2
    %p113 = por %p111, %p112
    %p114 = scmp.ne.s32.totalorder %s105, %s106
    %p115 = scmp.eq.s32.totalorder %s16, 0
    %p116 = por %p114, %p115
    %p117 = scmp.ne.s32.totalorder %s105, %s106
    %p118 = scmp.eq.s32.totalorder %s17, 2
    %p119 = por %p117, %p118
    %p121 = scmp.ne.s32.totalorder %s106, %s120
    %p122 = scmp.eq.s32.totalorder %s17, 0
    %p123 = por %p121, %p122
    %s125 = sadd.s32 %s124, 1
    %p128 = scmp.eq.s32.totalorder %s11, 2
    %p129 = scmp.ne.s32.totalorder %s124, %s126
    %p130 = scmp.eq.s32.totalorder %s11, 0
    %p131 = por %p129, %p130
    %p132 = scmp.ne.s32.totalorder %s124, %s126
    %p133 = scmp.eq.s32.totalorder %s16, 2
    %p134 = por %p132, %p133
    %p135 = scmp.ne.s32.totalorder %s126, %s127
    %p136 = scmp.eq.s32.totalorder %s16, 0
    %p137 = por %p135, %p136
    %p138 = scmp.ne.s32.totalorder %s126, %s127
    %p139 = scmp.eq.s32.totalorder %s17, 2
    %p140 = por %p138, %p139
    %p142 = scmp.ne.s32.totalorder %s127, %s141
    %p143 = scmp.eq.s32.totalorder %s17, 0
    %p144 = por %p142, %p143
    %p145 = scmp.eq.s32.totalorder %s18, 2
    %s146 = scalar_select %p145, %s19, 0
    %p147 = scmp.eq.s32.totalorder %s30, 2
    %s148 = scalar_select %p147, %s26, 0
    %s149 = ssub.s32 %s146, %s148
    %p150 = scmp.eq.s32.totalorder %s149, 0
    %s152 = sadd.s32 %s151, 1
    %s153 = scalar_select %p150, %s151, %s152
    %p156 = pneg %p150
    %p157 = scmp.eq.s32.totalorder %s11, 2
    %p158 = por %p156, %p157
    %p159 = scmp.ne.s32.totalorder %s151, %s154
    %p160 = scmp.eq.s32.totalorder %s11, 0
    %p161 = por %p159, %p160
    %p162 = scmp.ne.s32.totalorder %s151, %s154
    %p163 = scmp.eq.s32.totalorder %s16, 2
    %p164 = por %p162, %p163
    %p165 = scmp.ne.s32.totalorder %s154, %s155
    %p166 = scmp.eq.s32.totalorder %s16, 0
    %p167 = por %p165, %p166
    %p168 = scmp.ne.s32.totalorder %s154, %s155
    %p169 = scmp.eq.s32.totalorder %s17, 2
    %p170 = por %p168, %p169
    %p172 = scmp.ne.s32.totalorder %s155, %s171
    %p173 = scmp.eq.s32.totalorder %s17, 0
    %p174 = por %p172, %p173
    %p175 = scmp.le.s32.totalorder 1, %s11
    %p176 = scmp.lt.s32.totalorder %s11, 4
    %p177 = pnand %p175, %p176
    %p178 = pneg %p177
    // Predicated region
    $region9: #{run.2} parent=5 // pred_check
      _
    $region10: #{run.2} parent=5 // pred_check_branch
      %180 = sbr.rel (%p177) target = $region12
    $region11: #{run.2} parent=5 // pred_region
      %s181 = ssub.s32 %s11, 1
      // Predicated region
      $region13: #{run.2} parent=11 // pred_check
        %p182 = pneg %p74
      $region14: #{run.2} parent=11 // pred_check_branch
        %184 = sbr.rel (%p182) target = $region16
      $region15: #{run.2} parent=11 // pred_region
        _
      $region16: #{run.2} parent=11 // pred_fallthru
        _
      // Predicated region
      $region17: #{run.2} parent=11 // pred_check
        %p185 = pneg %p95
      $region18: #{run.2} parent=11 // pred_check_branch
        %187 = sbr.rel (%p185) target = $region20
      $region19: #{run.2} parent=11 // pred_region
        _
      $region20: #{run.2} parent=11 // pred_fallthru
        _
      // Predicated region
      $region21: #{run.2} parent=11 // pred_check
        %p188 = pneg %p116
      $region22: #{run.2} parent=11 // pred_check_branch
        %190 = sbr.rel (%p188) target = $region24
      $region23: #{run.2} parent=11 // pred_region
        _
      $region24: #{run.2} parent=11 // pred_fallthru
        _
      // Predicated region
      $region25: #{run.2} parent=11 // pred_check
        %p191 = pneg %p137
      $region26: #{run.2} parent=11 // pred_check_branch
        %193 = sbr.rel (%p191) target = $region28
      $region27: #{run.2} parent=11 // pred_region
        _
      $region28: #{run.2} parent=11 // pred_fallthru
        _
    $region12: #{run.2} parent=5 // pred_fallthru
      _
    %p194 = scmp.lt.s32.totalorder %s11, 3
    // Predicated region
    $region29: #{run.2} parent=5 // pred_check
      %p195 = pneg %p194
    $region30: #{run.2} parent=5 // pred_check_branch
      %197 = sbr.rel (%p195) target = $region32
    $region31: #{run.2} parent=5 // pred_region
      // Predicated region
      $region33: #{run.2} parent=31 // pred_check
        %p198 = pneg %p47
      $region34: #{run.2} parent=31 // pred_check_branch
        %200 = sbr.rel (%p198) target = $region36
      $region35: #{run.2} parent=31 // pred_region
        %p201 = scmp.eq.s32.totalorder %s18, 0
        %s202 = scalar_select %p201, %s19, 0
        %s203 = smul.u32 2, %s202
        %p204 = scmp.lt.s32.totalorder %s203, 1
        %s205 = scalar_select %p204, %s203, 1
        %s206 = smul.addr %s205, 4
        %s207 = scalar_lea.vmem %s0, %s206
        %p208 = scmp.eq.s32.totalorder %s18, 0
        %s209 = scalar_select %p208, %s19, 0
        %s210 = smul.u32 2, %s209
      $region36: #{run.2} parent=31 // pred_fallthru
        _
    $region32: #{run.2} parent=5 // pred_fallthru
      _
    %p211 = scmp.le.s32.totalorder 1, %s11
    %p212 = scmp.lt.s32.totalorder %s11, 4
    %p213 = pnand %p211, %p212
    %p214 = pneg %p213
    // Predicated region
    $region37: #{run.2} parent=5 // pred_check
      _
    $region38: #{run.2} parent=5 // pred_check_branch
      %216 = sbr.rel (%p213) target = $region40
    $region39: #{run.2} parent=5 // pred_region
      %s217 = ssub.s32 %s11, 1
      %p218 = scmp.eq.s32.totalorder %s20, 0
      %s219 = scalar_select %p218, %s21, 0
      %s220 = smul.u32 2, %s219
      %p221 = scmp.lt.s32.totalorder %s220, 1
      %s222 = scalar_select %p221, %s220, 1
      %s223 = smul.addr %s222, 4
      %s224 = scalar_lea.vmem %s0, %s223
      %p225 = pneg %p53
      %p226 = pneg %p50
      %p227 = pneg %p74
      %p228 = pneg %p71
      %p229 = pneg %p95
      %p230 = pneg %p92
      %p231 = pneg %p116
      %p232 = pneg %p113
      %p233 = pneg %p137
      %p234 = pneg %p134
      %p235 = pneg %p167
      %p236 = pneg %p164
      %p237 = scmp.eq.s32.totalorder %s20, 2
      %s238 = scalar_select %p237, %s21, 0
      %s239 = smul.u32 2, %s238
      %p240 = scmp.lt.s32.totalorder %s239, 1
      %s241 = scalar_select %p240, %s239, 1
      %s242 = smul.addr %s241, 8
      %s243 = scalar_lea.vmem %s5, %s242
      %p244 = scmp.eq.s32.totalorder %s20, 0
      %s245 = scalar_select %p244, %s21, 0
      %s246 = smul.u32 2, %s245
      %p247 = scmp.lt.s32.totalorder %s246, 1
      %s248 = scalar_select %p247, %s246, 1
      %s249 = smul.addr %s248, 4
      %s250 = scalar_lea.vmem %s0, %s249
      %p251 = scmp.eq.s32.totalorder %s20, 0
      %s252 = scalar_select %p251, %s21, 0
      %s253 = smul.u32 2, %s252
      %p254 = scmp.eq.s32.totalorder %s20, 2
      %s255 = scalar_select %p254, %s21, 0
      %s256 = smul.u32 2, %s255
      %p257 = scmp.lt.s32.totalorder %s256, 1
      %s258 = scalar_select %p257, %s256, 1
      %s259 = smul.addr %s258, 8
      %s260 = scalar_lea.vmem %s5, %s259
      %p261 = scmp.eq.s32.totalorder %s20, 2
      %s262 = scalar_select %p261, %s21, 0
      %s263 = smul.u32 2, %s262
      %s264 = smul.u32 %s21, 256
      %p265 = scmp.eq.s32.totalorder %s20, 0
      // Predicated region
      $region41: #{run.2} parent=39 // pred_check
        %p266 = pneg %p265
      $region42: #{run.2} parent=39 // pred_check_branch
        %268 = sbr.rel (%p266) target = $region44
      $region43: #{run.2} parent=39 // pred_region
        %p269 = scmp.eq.s32.totalorder %s21, 0
        // Predicated region
        $region45: #{run.2} parent=43 // pred_check
          %p270 = pneg %p269
        $region46: #{run.2} parent=43 // pred_check_branch
          %272 = sbr.rel (%p270) target = $region48
        $region47: #{run.2} parent=43 // pred_region
          %vm273 = vcmask 7168
          %274 = vst.msk [vmem:[#allocation3] sm:$0xff] %vm273, 0.0
          %275 = vst.msk [vmem:[#allocation3 + $0x8] sm:$0xff] %vm273, 0.0
          %276 = vst.msk [vmem:[#allocation3 + $0x10] sm:$0xff] %vm273, 0.0
          %277 = vst.msk [vmem:[#allocation3 + $0x18] sm:$0xff] %vm273, 0.0
          %278 = vst.msk [vmem:[#allocation4] sm:$0xff] %vm273, 0.0
          %279 = vst.msk [vmem:[#allocation4 + $0x8] sm:$0xff] %vm273, 0.0
          %280 = vst.msk [vmem:[#allocation4 + $0x10] sm:$0xff] %vm273, 0.0
          %281 = vst.msk [vmem:[#allocation4 + $0x18] sm:$0xff] %vm273, 0.0
        $region48: #{run.2} parent=43 // pred_fallthru
          _
        %v282 = vld [vmem:[%s250] sm:$0xff]
        %v283 = vld [vmem:[%s1] sm:$0xff]
        %v284 = vld [vmem:[%s1 + $0x8] sm:$0xff]
        %v285 = vld [vmem:[%s1 + $0x10] sm:$0xff]
        %v286 = vld [vmem:[%s1 + $0x18] sm:$0xff]
        %288 = vset.pattern.permute.xlu0 0
        %289 = vperm.xlu0 %288, %v283
        %v290 = vpop.permute.xlu0 %289
        %293 = vset.pattern.permute.xlu0 0
        %294 = vperm.xlu0 %293, %v284
        %v295 = vpop.permute.xlu0 %294
        %298 = vset.pattern.permute.xlu0 0
        %299 = vperm.xlu0 %298, %v285
        %v300 = vpop.permute.xlu0 %299
        %303 = vset.pattern.permute.xlu0 0
        %304 = vperm.xlu0 %303, %v286
        %v305 = vpop.permute.xlu0 %304
        %v308 = vperm.slane %v282, 0
        %v309 = vperm.slane %v282, 4
        %v312 = vperm.slane %v308, 0
        %v313 = vperm.slane %v309, 0
        %v314 = vmul.f32 %v290, %v312
        %v315 = vmul.f32 %v290, %v313
        %v316 = vmul.f32 %v295, %v312
        %v317 = vmul.f32 %v295, %v313
        %v318 = vmul.f32 %v300, %v312
        %v319 = vmul.f32 %v300, %v313
        %v320 = vmul.f32 %v305, %v312
        %v321 = vmul.f32 %v305, %v313
        %322 = vset.pattern.permute.xlu0 1
        %323 = vperm.xlu0 %322, %v283
        %v324 = vpop.permute.xlu0 %323
        %326 = vset.pattern.permute.xlu0 1
        %327 = vperm.xlu0 %326, %v284
        %v328 = vpop.permute.xlu0 %327
        %330 = vset.pattern.permute.xlu0 1
        %331 = vperm.xlu0 %330, %v285
        %v332 = vpop.permute.xlu0 %331
        %334 = vset.pattern.permute.xlu0 1
        %335 = vperm.xlu0 %334, %v286
        %v336 = vpop.permute.xlu0 %335
        %v338 = vperm.slane %v282, 1
        %v339 = vperm.slane %v282, 5
        %v342 = vperm.slane %v338, 1
        %v343 = vperm.slane %v339, 1
        %v344 = vmul.f32 %v324, %v342
        %v345 = vmul.f32 %v324, %v343
        %v346 = vmul.f32 %v328, %v342
        %v347 = vmul.f32 %v328, %v343
        %v348 = vmul.f32 %v332, %v342
        %v349 = vmul.f32 %v332, %v343
        %v350 = vmul.f32 %v336, %v342
        %v351 = vmul.f32 %v336, %v343
        %v352 = vadd.f32 %v314, %v344
        %v353 = vadd.f32 %v315, %v345
        %v354 = vadd.f32 %v316, %v346
        %v355 = vadd.f32 %v317, %v347
        %v356 = vadd.f32 %v318, %v348
        %v357 = vadd.f32 %v319, %v349
        %v358 = vadd.f32 %v320, %v350
        %v359 = vadd.f32 %v321, %v351
        %360 = vset.pattern.permute.xlu0 2
        %361 = vperm.xlu0 %360, %v283
        %v362 = vpop.permute.xlu0 %361
        %364 = vset.pattern.permute.xlu0 2
        %365 = vperm.xlu0 %364, %v284
        %v366 = vpop.permute.xlu0 %365
        %368 = vset.pattern.permute.xlu0 2
        %369 = vperm.xlu0 %368, %v285
        %v370 = vpop.permute.xlu0 %369
        %372 = vset.pattern.permute.xlu0 2
        %373 = vperm.xlu0 %372, %v286
        %v374 = vpop.permute.xlu0 %373
        %v376 = vperm.slane %v282, 2
        %v377 = vperm.slane %v282, 6
        %v380 = vperm.slane %v376, 2
        %v381 = vperm.slane %v377, 2
        %v382 = vmul.f32 %v362, %v380
        %v383 = vmul.f32 %v362, %v381
        %v384 = vmul.f32 %v366, %v380
        %v385 = vmul.f32 %v366, %v381
        %v386 = vmul.f32 %v370, %v380
        %v387 = vmul.f32 %v370, %v381
        %v388 = vmul.f32 %v374, %v380
        %v389 = vmul.f32 %v374, %v381
        %v390 = vadd.f32 %v352, %v382
        %v391 = vadd.f32 %v353, %v383
        %v392 = vadd.f32 %v354, %v384
        %v393 = vadd.f32 %v355, %v385
        %v394 = vadd.f32 %v356, %v386
        %v395 = vadd.f32 %v357, %v387
        %v396 = vadd.f32 %v358, %v388
        %v397 = vadd.f32 %v359, %v389
        %398 = vset.pattern.permute.xlu0 3
        %399 = vperm.xlu0 %398, %v283
        %v400 = vpop.permute.xlu0 %399
        %402 = vset.pattern.permute.xlu0 3
        %403 = vperm.xlu0 %402, %v284
        %v404 = vpop.permute.xlu0 %403
        %406 = vset.pattern.permute.xlu0 3
        %407 = vperm.xlu0 %406, %v285
        %v408 = vpop.permute.xlu0 %407
        %410 = vset.pattern.permute.xlu0 3
        %411 = vperm.xlu0 %410, %v286
        %v412 = vpop.permute.xlu0 %411
        %v414 = vperm.slane %v282, 3
        %v415 = vperm.slane %v282, 7
        %v418 = vperm.slane %v414, 3
        %v419 = vperm.slane %v415, 3
        %v420 = vmul.f32 %v400, %v418
        %v421 = vmul.f32 %v400, %v419
        %v422 = vmul.f32 %v404, %v418
        %v423 = vmul.f32 %v404, %v419
        %v424 = vmul.f32 %v408, %v418
        %v425 = vmul.f32 %v408, %v419
        %v426 = vmul.f32 %v412, %v418
        %v427 = vmul.f32 %v412, %v419
        %v428 = vadd.f32 %v390, %v420
        %v429 = vadd.f32 %v391, %v421
        %v430 = vadd.f32 %v392, %v422
        %v431 = vadd.f32 %v393, %v423
        %v432 = vadd.f32 %v394, %v424
        %v433 = vadd.f32 %v395, %v425
        %v434 = vadd.f32 %v396, %v426
        %v435 = vadd.f32 %v397, %v427
        %v436 = vld [vmem:[%s2] sm:$0xff]
        %v437 = vld [vmem:[%s2 + $0x8] sm:$0xff]
        %v438 = vld [vmem:[%s2 + $0x10] sm:$0xff]
        %v439 = vld [vmem:[%s2 + $0x18] sm:$0xff]
        %441 = vset.pattern.permute.xlu0 0
        %442 = vperm.xlu0 %441, %v436
        %v443 = vpop.permute.xlu0 %442
        %446 = vset.pattern.permute.xlu0 0
        %447 = vperm.xlu0 %446, %v437
        %v448 = vpop.permute.xlu0 %447
        %451 = vset.pattern.permute.xlu0 0
        %452 = vperm.xlu0 %451, %v438
        %v453 = vpop.permute.xlu0 %452
        %456 = vset.pattern.permute.xlu0 0
        %457 = vperm.xlu0 %456, %v439
        %v458 = vpop.permute.xlu0 %457
        %v460 = vadd.f32 %v428, %v443
        %v461 = vadd.f32 %v429, %v443
        %v462 = vadd.f32 %v430, %v448
        %v463 = vadd.f32 %v431, %v448
        %v464 = vadd.f32 %v432, %v453
        %v465 = vadd.f32 %v433, %v453
        %v466 = vadd.f32 %v434, %v458
        %v467 = vadd.f32 %v435, %v458
        %s468 = sshra.s32 %s264, 7
        %s469 = sand.u32 %s264, 127
        %s470 = smul.addr %s468, 8
        %s471 = scalar_lea.vmem [#allocation2], %s470
        %472 = vst [vmem:[%s471] sm:$0xff] %v460
        %473 = vst [vmem:[%s471 + $0x8] sm:$0xff] %v461
        %474 = vst [vmem:[%s471 + $0x10] sm:$0xff] %v462
        %475 = vst [vmem:[%s471 + $0x18] sm:$0xff] %v463
        %476 = vst [vmem:[%s471 + $0x20] sm:$0xff] %v464
        %477 = vst [vmem:[%s471 + $0x28] sm:$0xff] %v465
        %478 = vst [vmem:[%s471 + $0x30] sm:$0xff] %v466
        %479 = vst [vmem:[%s471 + $0x38] sm:$0xff] %v467
        %v480 = vld [vmem:[#allocation3] sm:$0xff]
        %v481 = vld [vmem:[#allocation3 + $0x8] sm:$0xff]
        %v482 = vld [vmem:[#allocation3 + $0x10] sm:$0xff]
        %v483 = vld [vmem:[#allocation3 + $0x18] sm:$0xff]
        %v484 = vadd.f32 %v460, %v461
        %485 = vadd.xlane.f32.xlu0 %v484
        %v486 = vpop.xlane.xlu0 %485
        %v487 = vadd.f32 %v462, %v463
        %488 = vadd.xlane.f32.xlu0 %v487
        %v489 = vpop.xlane.xlu0 %488
        %v490 = vadd.f32 %v464, %v465
        %491 = vadd.xlane.f32.xlu0 %v490
        %v492 = vpop.xlane.xlu0 %491
        %v493 = vadd.f32 %v466, %v467
        %494 = vadd.xlane.f32.xlu0 %v493
        %v495 = vpop.xlane.xlu0 %494
        %v496 = vadd.f32 %v480, %v486
        %v497 = vadd.f32 %v481, %v489
        %v498 = vadd.f32 %v482, %v492
        %v499 = vadd.f32 %v483, %v495
        %vm500 = vcmask 7168
        %501 = vst.msk [vmem:[#allocation3] sm:$0xff] %vm500, %v496
        %502 = vst.msk [vmem:[#allocation3 + $0x8] sm:$0xff] %vm500, %v497
        %503 = vst.msk [vmem:[#allocation3 + $0x10] sm:$0xff] %vm500, %v498
        %504 = vst.msk [vmem:[#allocation3 + $0x18] sm:$0xff] %vm500, %v499
      $region44: #{run.2} parent=39 // pred_fallthru
        _
      %p505 = scmp.eq.s32.totalorder %s20, 1
      // Predicated region
      $region49: #{run.2} parent=39 // pred_check
        %p506 = pneg %p505
      $region50: #{run.2} parent=39 // pred_check_branch
        %508 = sbr.rel (%p506) target = $region52
      $region51: #{run.2} parent=39 // pred_region
        %v509 = vld [vmem:[#allocation3] sm:$0xff]
        %v510 = vld [vmem:[#allocation3 + $0x8] sm:$0xff]
        %v511 = vld [vmem:[#allocation3 + $0x10] sm:$0xff]
        %v512 = vld [vmem:[#allocation3 + $0x18] sm:$0xff]
        %v513 = vmul.f32 %v509, 0.00390625
        %v514 = vmul.f32 %v510, 0.00390625
        %v515 = vmul.f32 %v511, 0.00390625
        %v516 = vmul.f32 %v512, 0.00390625
        %s517 = sshra.s32 %s264, 7
        %s518 = sand.u32 %s264, 127
        %s519 = smul.addr %s517, 8
        %s520 = scalar_lea.vmem [#allocation2], %s519
        %v521 = vld [vmem:[%s520] sm:$0xff]
        %v522 = vld [vmem:[%s520 + $0x8] sm:$0xff]
        %v523 = vld [vmem:[%s520 + $0x10] sm:$0xff]
        %v524 = vld [vmem:[%s520 + $0x18] sm:$0xff]
        %v525 = vld [vmem:[%s520 + $0x20] sm:$0xff]
        %v526 = vld [vmem:[%s520 + $0x28] sm:$0xff]
        %v527 = vld [vmem:[%s520 + $0x30] sm:$0xff]
        %v528 = vld [vmem:[%s520 + $0x38] sm:$0xff]
        %530 = vset.pattern.permute.xlu0 0
        %531 = vperm.xlu0 %530, %v513
        %v532 = vpop.permute.xlu0 %531
        %535 = vset.pattern.permute.xlu0 0
        %536 = vperm.xlu0 %535, %v514
        %v537 = vpop.permute.xlu0 %536
        %540 = vset.pattern.permute.xlu0 0
        %541 = vperm.xlu0 %540, %v515
        %v542 = vpop.permute.xlu0 %541
        %545 = vset.pattern.permute.xlu0 0
        %546 = vperm.xlu0 %545, %v516
        %v547 = vpop.permute.xlu0 %546
        %v549 = vsub.f32 %v521, %v532
        %v550 = vsub.f32 %v522, %v532
        %v551 = vsub.f32 %v523, %v537
        %v552 = vsub.f32 %v524, %v537
        %v553 = vsub.f32 %v525, %v542
        %v554 = vsub.f32 %v526, %v542
        %v555 = vsub.f32 %v527, %v547
        %v556 = vsub.f32 %v528, %v547
        %v557 = vld [vmem:[#allocation4] sm:$0xff]
        %v558 = vld [vmem:[#allocation4 + $0x8] sm:$0xff]
        %v559 = vld [vmem:[#allocation4 + $0x10] sm:$0xff]
        %v560 = vld [vmem:[#allocation4 + $0x18] sm:$0xff]
        %v561 = vmul.f32 %v549, %v549
        %v562 = vmul.f32 %v550, %v550
        %v563 = vmul.f32 %v551, %v551
        %v564 = vmul.f32 %v552, %v552
        %v565 = vmul.f32 %v553, %v553
        %v566 = vmul.f32 %v554, %v554
        %v567 = vmul.f32 %v555, %v555
        %v568 = vmul.f32 %v556, %v556
        %v569 = vadd.f32 %v561, %v562
        %570 = vadd.xlane.f32.xlu0 %v569
        %v571 = vpop.xlane.xlu0 %570
        %v572 = vadd.f32 %v563, %v564
        %573 = vadd.xlane.f32.xlu0 %v572
        %v574 = vpop.xlane.xlu0 %573
        %v575 = vadd.f32 %v565, %v566
        %576 = vadd.xlane.f32.xlu0 %v575
        %v577 = vpop.xlane.xlu0 %576
        %v578 = vadd.f32 %v567, %v568
        %579 = vadd.xlane.f32.xlu0 %v578
        %v580 = vpop.xlane.xlu0 %579
        %v581 = vadd.f32 %v557, %v571
        %v582 = vadd.f32 %v558, %v574
        %v583 = vadd.f32 %v559, %v577
        %v584 = vadd.f32 %v560, %v580
        %vm585 = vcmask 7168
        %586 = vst.msk [vmem:[#allocation4] sm:$0xff] %vm585, %v581
        %587 = vst.msk [vmem:[#allocation4 + $0x8] sm:$0xff] %vm585, %v582
        %588 = vst.msk [vmem:[#allocation4 + $0x10] sm:$0xff] %vm585, %v583
        %589 = vst.msk [vmem:[#allocation4 + $0x18] sm:$0xff] %vm585, %v584
      $region52: #{run.2} parent=39 // pred_fallthru
        _
      %p590 = scmp.eq.s32.totalorder %s20, 2
      // Predicated region
      $region53: #{run.2} parent=39 // pred_check
        %p591 = pneg %p590
      $region54: #{run.2} parent=39 // pred_check_branch
        %593 = sbr.rel (%p591) target = $region56
      $region55: #{run.2} parent=39 // pred_region
        %v594 = vld [vmem:[#allocation3] sm:$0xff]
        %v595 = vld [vmem:[#allocation3 + $0x8] sm:$0xff]
        %v596 = vld [vmem:[#allocation3 + $0x10] sm:$0xff]
        %v597 = vld [vmem:[#allocation3 + $0x18] sm:$0xff]
        %v598 = vmul.f32 %v594, 0.00390625
        %v599 = vmul.f32 %v595, 0.00390625
        %v600 = vmul.f32 %v596, 0.00390625
        %v601 = vmul.f32 %v597, 0.00390625
        %v602 = vld [vmem:[#allocation4] sm:$0xff]
        %v603 = vld [vmem:[#allocation4 + $0x8] sm:$0xff]
        %v604 = vld [vmem:[#allocation4 + $0x10] sm:$0xff]
        %v605 = vld [vmem:[#allocation4 + $0x18] sm:$0xff]
        %v606 = vmul.f32 %v602, 0.00390625
        %v607 = vmul.f32 %v603, 0.00390625
        %v608 = vmul.f32 %v604, 0.00390625
        %v609 = vmul.f32 %v605, 0.00390625
        %v610 = vadd.f32 %v606, 1e-05
        %v611 = vadd.f32 %v607, 1e-05
        %v612 = vadd.f32 %v608, 1e-05
        %v613 = vadd.f32 %v609, 1e-05
        %v614 = vrsqrt.pop %v610
        %v615 = vmul.f32 %v614, %v610
        %v616 = vmul.f32 %v615, %v614
        %v617 = vmul.f32 0.5, %v616
        %v618 = vsub.f32 1.5, %v617
        %v619 = vmul.f32 %v614, %v618
        %vm620 = vweird.f32 %v610
        %vm621 = vweird.f32 %v614
        %vm622 = vmor %vm620, %vm621
        %v623 = vsel %vm622, %v614, %v619
        %v624 = vrsqrt.pop %v611
        %v625 = vmul.f32 %v624, %v611
        %v626 = vmul.f32 %v625, %v624
        %v627 = vmul.f32 0.5, %v626
        %v628 = vsub.f32 1.5, %v627
        %v629 = vmul.f32 %v624, %v628
        %vm630 = vweird.f32 %v611
        %vm631 = vweird.f32 %v624
        %vm632 = vmor %vm630, %vm631
        %v633 = vsel %vm632, %v624, %v629
        %v634 = vrsqrt.pop %v612
        %v635 = vmul.f32 %v634, %v612
        %v636 = vmul.f32 %v635, %v634
        %v637 = vmul.f32 0.5, %v636
        %v638 = vsub.f32 1.5, %v637
        %v639 = vmul.f32 %v634, %v638
        %vm640 = vweird.f32 %v612
        %vm641 = vweird.f32 %v634
        %vm642 = vmor %vm640, %vm641
        %v643 = vsel %vm642, %v634, %v639
        %v644 = vrsqrt.pop %v613
        %v645 = vmul.f32 %v644, %v613
        %v646 = vmul.f32 %v645, %v644
        %v647 = vmul.f32 0.5, %v646
        %v648 = vsub.f32 1.5, %v647
        %v649 = vmul.f32 %v644, %v648
        %vm650 = vweird.f32 %v613
        %vm651 = vweird.f32 %v644
        %vm652 = vmor %vm650, %vm651
        %v653 = vsel %vm652, %v644, %v649
        %v654 = vld [vmem:[%s3] sm:$0xff]
        %v655 = vld [vmem:[%s3 + $0x8] sm:$0xff]
        %v656 = vld [vmem:[%s3 + $0x10] sm:$0xff]
        %v657 = vld [vmem:[%s3 + $0x18] sm:$0xff]
        %v658 = vmul.f32 %v623, %v654
        %v659 = vmul.f32 %v633, %v655
        %v660 = vmul.f32 %v643, %v656
        %v661 = vmul.f32 %v653, %v657
        %s662 = sshra.s32 %s264, 7
        %s663 = sand.u32 %s264, 127
        %s664 = smul.addr %s662, 8
        %s665 = scalar_lea.vmem [#allocation2], %s664
        %v666 = vld [vmem:[%s665] sm:$0xff]
        %v667 = vld [vmem:[%s665 + $0x8] sm:$0xff]
        %v668 = vld [vmem:[%s665 + $0x10] sm:$0xff]
        %v669 = vld [vmem:[%s665 + $0x18] sm:$0xff]
        %v670 = vld [vmem:[%s665 + $0x20] sm:$0xff]
        %v671 = vld [vmem:[%s665 + $0x28] sm:$0xff]
        %v672 = vld [vmem:[%s665 + $0x30] sm:$0xff]
        %v673 = vld [vmem:[%s665 + $0x38] sm:$0xff]
        %675 = vset.pattern.permute.xlu0 0
        %676 = vperm.xlu0 %675, %v598
        %v677 = vpop.permute.xlu0 %676
        %680 = vset.pattern.permute.xlu0 0
        %681 = vperm.xlu0 %680, %v599
        %v682 = vpop.permute.xlu0 %681
        %685 = vset.pattern.permute.xlu0 0
        %686 = vperm.xlu0 %685, %v600
        %v687 = vpop.permute.xlu0 %686
        %690 = vset.pattern.permute.xlu0 0
        %691 = vperm.xlu0 %690, %v601
        %v692 = vpop.permute.xlu0 %691
        %v694 = vsub.f32 %v666, %v677
        %v695 = vsub.f32 %v667, %v677
        %v696 = vsub.f32 %v668, %v682
        %v697 = vsub.f32 %v669, %v682
        %v698 = vsub.f32 %v670, %v687
        %v699 = vsub.f32 %v671, %v687
        %v700 = vsub.f32 %v672, %v692
        %v701 = vsub.f32 %v673, %v692
        %703 = vset.pattern.permute.xlu0 0
        %704 = vperm.xlu0 %703, %v658
        %v705 = vpop.permute.xlu0 %704
        %708 = vset.pattern.permute.xlu0 0
        %709 = vperm.xlu0 %708, %v659
        %v710 = vpop.permute.xlu0 %709
        %713 = vset.pattern.permute.xlu0 0
        %714 = vperm.xlu0 %713, %v660
        %v715 = vpop.permute.xlu0 %714
        %718 = vset.pattern.permute.xlu0 0
        %719 = vperm.xlu0 %718, %v661
        %v720 = vpop.permute.xlu0 %719
        %v722 = vmul.f32 %v694, %v705
        %v723 = vmul.f32 %v695, %v705
        %v724 = vmul.f32 %v696, %v710
        %v725 = vmul.f32 %v697, %v710
        %v726 = vmul.f32 %v698, %v715
        %v727 = vmul.f32 %v699, %v715
        %v728 = vmul.f32 %v700, %v720
        %v729 = vmul.f32 %v701, %v720
        %v730 = vld [vmem:[%s4] sm:$0xff]
        %v731 = vld [vmem:[%s4 + $0x8] sm:$0xff]
        %v732 = vld [vmem:[%s4 + $0x10] sm:$0xff]
        %v733 = vld [vmem:[%s4 + $0x18] sm:$0xff]
        %735 = vset.pattern.permute.xlu0 0
        %736 = vperm.xlu0 %735, %v730
        %v737 = vpop.permute.xlu0 %736
        %740 = vset.pattern.permute.xlu0 0
        %741 = vperm.xlu0 %740, %v731
        %v742 = vpop.permute.xlu0 %741
        %745 = vset.pattern.permute.xlu0 0
        %746 = vperm.xlu0 %745, %v732
        %v747 = vpop.permute.xlu0 %746
        %750 = vset.pattern.permute.xlu0 0
        %751 = vperm.xlu0 %750, %v733
        %v752 = vpop.permute.xlu0 %751
        %v754 = vadd.f32 %v722, %v737
        %v755 = vadd.f32 %v723, %v737
        %v756 = vadd.f32 %v724, %v742
        %v757 = vadd.f32 %v725, %v742
        %v758 = vadd.f32 %v726, %v747
        %v759 = vadd.f32 %v727, %v747
        %v760 = vadd.f32 %v728, %v752
        %v761 = vadd.f32 %v729, %v752
        %v762 = vmax.f32 %v754, 0.0
        %v763 = vmax.f32 %v755, 0.0
        %v764 = vmax.f32 %v756, 0.0
        %v765 = vmax.f32 %v757, 0.0
        %v766 = vmax.f32 %v758, 0.0
        %v767 = vmax.f32 %v759, 0.0
        %v768 = vmax.f32 %v760, 0.0
        %v769 = vmax.f32 %v761, 0.0
        %770 = vst [vmem:[%s260] sm:$0xff] %v762
        %771 = vst [vmem:[%s260 + $0x8] sm:$0xff] %v763
        %772 = vst [vmem:[%s260 + $0x10] sm:$0xff] %v764
        %773 = vst [vmem:[%s260 + $0x18] sm:$0xff] %v765
        %774 = vst [vmem:[%s260 + $0x20] sm:$0xff] %v766
        %775 = vst [vmem:[%s260 + $0x28] sm:$0xff] %v767
        %776 = vst [vmem:[%s260 + $0x30] sm:$0xff] %v768
        %777 = vst [vmem:[%s260 + $0x38] sm:$0xff] %v769
      $region56: #{run.2} parent=39 // pred_fallthru
        _
      %p778 = scmp.eq.s32.totalorder %s20, 2
      %s779 = scalar_select %p778, %s21, 0
      %s780 = smul.u32 2, %s779
      %p781 = scmp.lt.s32.totalorder %s780, 1
      %s782 = scalar_select %p781, %s780, 1
      %s783 = smul.addr %s782, 8
      %s784 = scalar_lea.vmem %s5, %s783
      // Predicated region
      $region57: #{run.2} parent=39 // pred_check
        %p785 = pneg %p164
      $region58: #{run.2} parent=39 // pred_check_branch
        %787 = sbr.rel (%p785) target = $region60
      $region59: #{run.2} parent=39 // pred_region
        %p788 = scmp.eq.s32.totalorder %s20, 2
        %s789 = scalar_select %p788, %s21, 0
        %s790 = smul.u32 2, %s789
      $region60: #{run.2} parent=39 // pred_fallthru
        _
    $region40: #{run.2} parent=5 // pred_fallthru
      _
    %p791 = scmp.le.s32.totalorder 2, %s11
    // Predicated region
    $region61: #{run.2} parent=5 // pred_check
      %p792 = pneg %p791
    $region62: #{run.2} parent=5 // pred_check_branch
      %794 = sbr.rel (%p792) target = $region64
    $region63: #{run.2} parent=5 // pred_region
      %s795 = ssub.s32 %s11, 2
      // Predicated region
      $region65: #{run.2} parent=63 // pred_check
        %p796 = pneg %p170
      $region66: #{run.2} parent=63 // pred_check_branch
        %798 = sbr.rel (%p796) target = $region68
      $region67: #{run.2} parent=63 // pred_region
        %p799 = scmp.eq.s32.totalorder %s22, 2
        %s800 = scalar_select %p799, %s23, 0
        %s801 = smul.u32 2, %s800
        %p802 = scmp.lt.s32.totalorder %s801, 1
        %s803 = scalar_select %p802, %s801, 1
        %s804 = smul.addr %s803, 8
        %s805 = scalar_lea.vmem %s5, %s804
      $region68: #{run.2} parent=63 // pred_fallthru
        _
    $region64: #{run.2} parent=5 // pred_fallthru
      _
  $region6: #{run.2} parent=0 // loop_footer
    %s15 = sadd.s32 1, %s11
  $region7: #{run.2} parent=0 // loop_footer_branch
    %10 = sbr.rel target = $region3
  $region8: #{run.2} parent=0 // loop_exit
    _

// kernel: run.3
$region0: #{run.3}
  #allocation0 [shape = 'u32[]', space=smem, size = 0x4, offset = 0x4, fixed_abs, tag = 'smem constant byte address 0x4 - core index']
  #allocation1 [shape = 'u32[72,128]{1,0:T(1,128)}', space=vmem, size = 0x9000, scoped, tag = 'internal scratch']
  #allocation2 [shape = 'f32[32,256]{1,0:T(8,128)}', space=vmem, size = 0x8000, scoped, tag = 'scratch operand']
  #allocation3 [shape = 'f32[32,1]{1,0:T(8,128)}', space=vmem, size = 0x4000, scoped, tag = 'scratch operand']
  #allocation4 [shape = 'f32[32,1]{1,0:T(8,128)}', space=vmem, size = 0x4000, scoped, tag = 'scratch operand']
  %s0 = inlined_call_operand.vmem [shape: f32[32,256], index: 0, kind: input, shape index: {}]
  %s1 = inlined_call_operand.vmem [shape: f32[32,32], index: 1, kind: input, shape index: {}]
  %s2 = inlined_call_operand.vmem [shape: f32[32,1], index: 2, kind: input, shape index: {}]
  %s3 = inlined_call_operand.vmem [shape: f32[32,1], index: 3, kind: input, shape index: {}]
  %s4 = inlined_call_operand.vmem [shape: f32[32,1], index: 4, kind: input, shape index: {}]
  %s5 = inlined_call_operand.vmem [shape: f32[32,256], index: 5, kind: output, shape index: {}]
  %s6 = sld [smem:[#allocation0]]
  $region69: #{run.3} parent=0
    _
  %s8 = ssub.s32 1, %s6
  %s9 = scalar_select 0, %s8, %s6
  loop: start=0, step=1, limit=5
  $region2: #{run.3} parent=0 // loop_pre_header
    _
  $region3: #{run.3} parent=0 // loop_header
    %s11 = sphi 0, %s15
    %p12 = scmp.ge.s32.totalorder %s11, 5
    %s18 = sphi 0, %s30
    %s19 = sphi 0, %s26
    %s20 = sphi 0, %s18
    %s21 = sphi 0, %s19
    %s22 = sphi 0, %s20
    %s23 = sphi 0, %s21
    %s37 = sphi 0, %s39
    %s40 = sphi 0, %s37
    %s41 = sphi 0, %s40
    %s57 = sphi 0, %s41
    %s61 = sphi 0, %s61
    %s63 = sphi 0, %s61
    %s64 = sphi 0, %s63
    %s78 = sphi 0, %s64
    %s82 = sphi 0, %s82
    %s84 = sphi 0, %s82
    %s85 = sphi 0, %s84
    %s99 = sphi 0, %s85
    %s103 = sphi 0, %s103
    %s105 = sphi 0, %s103
    %s106 = sphi 0, %s105
    %s120 = sphi 0, %s106
    %s124 = sphi 0, %s124
    %s126 = sphi 0, %s124
    %s127 = sphi 0, %s126
    %s141 = sphi 0, %s127
    %s151 = sphi 0, %s153
    %s154 = sphi 0, %s151
    %s155 = sphi 0, %s154
    %s171 = sphi 0, %s155
  $region4: #{run.3} parent=0 // loop_header_branch
    %14 = sbr.rel (%p12) target = $region8
  $region5: #{run.3} parent=0 // loop_body
    %s16 = ssub.s32 %s11, 1
    %s17 = ssub.s32 %s11, 2
    %s24 = sadd.s32 1, %s19
    %p25 = scmp.ge.s32.totalorder %s24, 1
    %s26 = scalar_select %p25, 0, %s24
    %s27 = sadd.s32 1, %s18
    %s28 = scalar_select %p25, %s27, %s18
    %p29 = scmp.ge.s32.totalorder %s28, 3
    %s30 = scalar_select %p29, 0, %s28
    %p31 = scmp.eq.s32.totalorder %s18, 0
    %s32 = scalar_select %p31, %s19, 0
    %p33 = scmp.eq.s32.totalorder %s30, 0
    %s34 = scalar_select %p33, %s26, 0
    %s35 = ssub.s32 %s32, %s34
    %p36 = scmp.eq.s32.totalorder %s35, 0
    %s38 = sadd.s32 %s37, 1
    %s39 = scalar_select %p36, %s37, %s38
    %p42 = pneg %p36
    %p43 = scmp.eq.s32.totalorder %s11, 2
    %p44 = por %p42, %p43
    %p45 = scmp.ne.s32.totalorder %s37, %s40
    %p46 = scmp.eq.s32.totalorder %s11, 0
    %p47 = por %p45, %p46
    %p48 = scmp.ne.s32.totalorder %s37, %s40
    %p49 = scmp.eq.s32.totalorder %s16, 2
    %p50 = por %p48, %p49
    %p51 = scmp.ne.s32.totalorder %s40, %s41
    %p52 = scmp.eq.s32.totalorder %s16, 0
    %p53 = por %p51, %p52
    %p54 = scmp.ne.s32.totalorder %s40, %s41
    %p55 = scmp.eq.s32.totalorder %s17, 2
    %p56 = por %p54, %p55
    %p58 = scmp.ne.s32.totalorder %s41, %s57
    %p59 = scmp.eq.s32.totalorder %s17, 0
    %p60 = por %p58, %p59
    %s62 = sadd.s32 %s61, 1
    %p65 = scmp.eq.s32.totalorder %s11, 2
    %p66 = scmp.ne.s32.totalorder %s61, %s63
    %p67 = scmp.eq.s32.totalorder %s11, 0
    %p68 = por %p66, %p67
    %p69 = scmp.ne.s32.totalorder %s61, %s63
    %p70 = scmp.eq.s32.totalorder %s16, 2
    %p71 = por %p69, %p70
    %p72 = scmp.ne.s32.totalorder %s63, %s64
    %p73 = scmp.eq.s32.totalorder %s16, 0
    %p74 = por %p72, %p73
    %p75 = scmp.ne.s32.totalorder %s63, %s64
    %p76 = scmp.eq.s32.totalorder %s17, 2
    %p77 = por %p75, %p76
    %p79 = scmp.ne.s32.totalorder %s64, %s78
    %p80 = scmp.eq.s32.totalorder %s17, 0
    %p81 = por %p79, %p80
    %s83 = sadd.s32 %s82, 1
    %p86 = scmp.eq.s32.totalorder %s11, 2
    %p87 = scmp.ne.s32.totalorder %s82, %s84
    %p88 = scmp.eq.s32.totalorder %s11, 0
    %p89 = por %p87, %p88
    %p90 = scmp.ne.s32.totalorder %s82, %s84
    %p91 = scmp.eq.s32.totalorder %s16, 2
    %p92 = por %p90, %p91
    %p93 = scmp.ne.s32.totalorder %s84, %s85
    %p94 = scmp.eq.s32.totalorder %s16, 0
    %p95 = por %p93, %p94
    %p96 = scmp.ne.s32.totalorder %s84, %s85
    %p97 = scmp.eq.s32.totalorder %s17, 2
    %p98 = por %p96, %p97
    %p100 = scmp.ne.s32.totalorder %s85, %s99
    %p101 = scmp.eq.s32.totalorder %s17, 0
    %p102 = por %p100, %p101
    %s104 = sadd.s32 %s103, 1
    %p107 = scmp.eq.s32.totalorder %s11, 2
    %p108 = scmp.ne.s32.totalorder %s103, %s105
    %p109 = scmp.eq.s32.totalorder %s11, 0
    %p110 = por %p108, %p109
    %p111 = scmp.ne.s32.totalorder %s103, %s105
    %p112 = scmp.eq.s32.totalorder %s16, 2
    %p113 = por %p111, %p112
    %p114 = scmp.ne.s32.totalorder %s105, %s106
    %p115 = scmp.eq.s32.totalorder %s16, 0
    %p116 = por %p114, %p115
    %p117 = scmp.ne.s32.totalorder %s105, %s106
    %p118 = scmp.eq.s32.totalorder %s17, 2
    %p119 = por %p117, %p118
    %p121 = scmp.ne.s32.totalorder %s106, %s120
    %p122 = scmp.eq.s32.totalorder %s17, 0
    %p123 = por %p121, %p122
    %s125 = sadd.s32 %s124, 1
    %p128 = scmp.eq.s32.totalorder %s11, 2
    %p129 = scmp.ne.s32.totalorder %s124, %s126
    %p130 = scmp.eq.s32.totalorder %s11, 0
    %p131 = por %p129, %p130
    %p132 = scmp.ne.s32.totalorder %s124, %s126
    %p133 = scmp.eq.s32.totalorder %s16, 2
    %p134 = por %p132, %p133
    %p135 = scmp.ne.s32.totalorder %s126, %s127
    %p136 = scmp.eq.s32.totalorder %s16, 0
    %p137 = por %p135, %p136
    %p138 = scmp.ne.s32.totalorder %s126, %s127
    %p139 = scmp.eq.s32.totalorder %s17, 2
    %p140 = por %p138, %p139
    %p142 = scmp.ne.s32.totalorder %s127, %s141
    %p143 = scmp.eq.s32.totalorder %s17, 0
    %p144 = por %p142, %p143
    %p145 = scmp.eq.s32.totalorder %s18, 2
    %s146 = scalar_select %p145, %s19, 0
    %p147 = scmp.eq.s32.totalorder %s30, 2
    %s148 = scalar_select %p147, %s26, 0
    %s149 = ssub.s32 %s146, %s148
    %p150 = scmp.eq.s32.totalorder %s149, 0
    %s152 = sadd.s32 %s151, 1
    %s153 = scalar_select %p150, %s151, %s152
    %p156 = pneg %p150
    %p157 = scmp.eq.s32.totalorder %s11, 2
    %p158 = por %p156, %p157
    %p159 = scmp.ne.s32.totalorder %s151, %s154
    %p160 = scmp.eq.s32.totalorder %s11, 0
    %p161 = por %p159, %p160
    %p162 = scmp.ne.s32.totalorder %s151, %s154
    %p163 = scmp.eq.s32.totalorder %s16, 2
    %p164 = por %p162, %p163
    %p165 = scmp.ne.s32.totalorder %s154, %s155
    %p166 = scmp.eq.s32.totalorder %s16, 0
    %p167 = por %p165, %p166
    %p168 = scmp.ne.s32.totalorder %s154, %s155
    %p169 = scmp.eq.s32.totalorder %s17, 2
    %p170 = por %p168, %p169
    %p172 = scmp.ne.s32.totalorder %s155, %s171
    %p173 = scmp.eq.s32.totalorder %s17, 0
    %p174 = por %p172, %p173
    %p175 = scmp.le.s32.totalorder 1, %s11
    %p176 = scmp.lt.s32.totalorder %s11, 4
    %p177 = pnand %p175, %p176
    %p178 = pneg %p177
    // Predicated region
    $region9: #{run.3} parent=5 // pred_check
      _
    $region10: #{run.3} parent=5 // pred_check_branch
      %180 = sbr.rel (%p177) target = $region12
    $region11: #{run.3} parent=5 // pred_region
      %s181 = ssub.s32 %s11, 1
      // Predicated region
      $region13: #{run.3} parent=11 // pred_check
        %p182 = pneg %p74
      $region14: #{run.3} parent=11 // pred_check_branch
        %184 = sbr.rel (%p182) target = $region16
      $region15: #{run.3} parent=11 // pred_region
        _
      $region16: #{run.3} parent=11 // pred_fallthru
        _
      // Predicated region
      $region17: #{run.3} parent=11 // pred_check
        %p185 = pneg %p95
      $region18: #{run.3} parent=11 // pred_check_branch
        %187 = sbr.rel (%p185) target = $region20
      $region19: #{run.3} parent=11 // pred_region
        _
      $region20: #{run.3} parent=11 // pred_fallthru
        _
      // Predicated region
      $region21: #{run.3} parent=11 // pred_check
        %p188 = pneg %p116
      $region22: #{run.3} parent=11 // pred_check_branch
        %190 = sbr.rel (%p188) target = $region24
      $region23: #{run.3} parent=11 // pred_region
        _
      $region24: #{run.3} parent=11 // pred_fallthru
        _
      // Predicated region
      $region25: #{run.3} parent=11 // pred_check
        %p191 = pneg %p137
      $region26: #{run.3} parent=11 // pred_check_branch
        %193 = sbr.rel (%p191) target = $region28
      $region27: #{run.3} parent=11 // pred_region
        _
      $region28: #{run.3} parent=11 // pred_fallthru
        _
    $region12: #{run.3} parent=5 // pred_fallthru
      _
    %p194 = scmp.lt.s32.totalorder %s11, 3
    // Predicated region
    $region29: #{run.3} parent=5 // pred_check
      %p195 = pneg %p194
    $region30: #{run.3} parent=5 // pred_check_branch
      %197 = sbr.rel (%p195) target = $region32
    $region31: #{run.3} parent=5 // pred_region
      // Predicated region
      $region33: #{run.3} parent=31 // pred_check
        %p198 = pneg %p47
      $region34: #{run.3} parent=31 // pred_check_branch
        %200 = sbr.rel (%p198) target = $region36
      $region35: #{run.3} parent=31 // pred_region
        %p201 = scmp.eq.s32.totalorder %s18, 0
        %s202 = scalar_select %p201, %s19, 0
        %s203 = smul.u32 2, %s202
        %p204 = scmp.lt.s32.totalorder %s203, 1
        %s205 = scalar_select %p204, %s203, 1
        %s206 = smul.addr %s205, 8
        %s207 = scalar_lea.vmem %s0, %s206
        %p208 = scmp.eq.s32.totalorder %s18, 0
        %s209 = scalar_select %p208, %s19, 0
        %s210 = smul.u32 2, %s209
      $region36: #{run.3} parent=31 // pred_fallthru
        _
    $region32: #{run.3} parent=5 // pred_fallthru
      _
    %p211 = scmp.le.s32.totalorder 1, %s11
    %p212 = scmp.lt.s32.totalorder %s11, 4
    %p213 = pnand %p211, %p212
    %p214 = pneg %p213
    // Predicated region
    $region37: #{run.3} parent=5 // pred_check
      _
    $region38: #{run.3} parent=5 // pred_check_branch
      %216 = sbr.rel (%p213) target = $region40
    $region39: #{run.3} parent=5 // pred_region
      %s217 = ssub.s32 %s11, 1
      %p218 = scmp.eq.s32.totalorder %s20, 0
      %s219 = scalar_select %p218, %s21, 0
      %s220 = smul.u32 2, %s219
      %p221 = scmp.lt.s32.totalorder %s220, 1
      %s222 = scalar_select %p221, %s220, 1
      %s223 = smul.addr %s222, 8
      %s224 = scalar_lea.vmem %s0, %s223
      %p225 = pneg %p53
      %p226 = pneg %p50
      %p227 = pneg %p74
      %p228 = pneg %p71
      %p229 = pneg %p95
      %p230 = pneg %p92
      %p231 = pneg %p116
      %p232 = pneg %p113
      %p233 = pneg %p137
      %p234 = pneg %p134
      %p235 = pneg %p167
      %p236 = pneg %p164
      %p237 = scmp.eq.s32.totalorder %s20, 2
      %s238 = scalar_select %p237, %s21, 0
      %s239 = smul.u32 2, %s238
      %p240 = scmp.lt.s32.totalorder %s239, 1
      %s241 = scalar_select %p240, %s239, 1
      %s242 = smul.addr %s241, 8
      %s243 = scalar_lea.vmem %s5, %s242
      %p244 = scmp.eq.s32.totalorder %s20, 0
      %s245 = scalar_select %p244, %s21, 0
      %s246 = smul.u32 2, %s245
      %p247 = scmp.lt.s32.totalorder %s246, 1
      %s248 = scalar_select %p247, %s246, 1
      %s249 = smul.addr %s248, 8
      %s250 = scalar_lea.vmem %s0, %s249
      %p251 = scmp.eq.s32.totalorder %s20, 0
      %s252 = scalar_select %p251, %s21, 0
      %s253 = smul.u32 2, %s252
      %p254 = scmp.eq.s32.totalorder %s20, 2
      %s255 = scalar_select %p254, %s21, 0
      %s256 = smul.u32 2, %s255
      %p257 = scmp.lt.s32.totalorder %s256, 1
      %s258 = scalar_select %p257, %s256, 1
      %s259 = smul.addr %s258, 8
      %s260 = scalar_lea.vmem %s5, %s259
      %p261 = scmp.eq.s32.totalorder %s20, 2
      %s262 = scalar_select %p261, %s21, 0
      %s263 = smul.u32 2, %s262
      %s264 = smul.u32 %s21, 256
      %p265 = scmp.eq.s32.totalorder %s20, 0
      // Predicated region
      $region41: #{run.3} parent=39 // pred_check
        %p266 = pneg %p265
      $region42: #{run.3} parent=39 // pred_check_branch
        %268 = sbr.rel (%p266) target = $region44
      $region43: #{run.3} parent=39 // pred_region
        %p269 = scmp.eq.s32.totalorder %s21, 0
        // Predicated region
        $region45: #{run.3} parent=43 // pred_check
          %p270 = pneg %p269
        $region46: #{run.3} parent=43 // pred_check_branch
          %272 = sbr.rel (%p270) target = $region48
        $region47: #{run.3} parent=43 // pred_region
          %vm273 = vcmask 7168
          %274 = vst.msk [vmem:[#allocation3] sm:$0xff] %vm273, 0.0
          %275 = vst.msk [vmem:[#allocation3 + $0x8] sm:$0xff] %vm273, 0.0
          %276 = vst.msk [vmem:[#allocation3 + $0x10] sm:$0xff] %vm273, 0.0
          %277 = vst.msk [vmem:[#allocation3 + $0x18] sm:$0xff] %vm273, 0.0
          %278 = vst.msk [vmem:[#allocation4] sm:$0xff] %vm273, 0.0
          %279 = vst.msk [vmem:[#allocation4 + $0x8] sm:$0xff] %vm273, 0.0
          %280 = vst.msk [vmem:[#allocation4 + $0x10] sm:$0xff] %vm273, 0.0
          %281 = vst.msk [vmem:[#allocation4 + $0x18] sm:$0xff] %vm273, 0.0
        $region48: #{run.3} parent=43 // pred_fallthru
          _
        %v282 = vld [vmem:[%s250] sm:$0xff]
        %v283 = vld [vmem:[%s250 + $0x8] sm:$0xff]
        %v284 = vld [vmem:[%s250 + $0x10] sm:$0xff]
        %v285 = vld [vmem:[%s250 + $0x18] sm:$0xff]
        %v286 = vld [vmem:[%s250 + $0x20] sm:$0xff]
        %v287 = vld [vmem:[%s250 + $0x28] sm:$0xff]
        %v288 = vld [vmem:[%s250 + $0x30] sm:$0xff]
        %v289 = vld [vmem:[%s250 + $0x38] sm:$0xff]
        %v290 = vld [vmem:[%s1] sm:$0xff]
        %v291 = vld [vmem:[%s1 + $0x8] sm:$0xff]
        %v292 = vld [vmem:[%s1 + $0x10] sm:$0xff]
        %v293 = vld [vmem:[%s1 + $0x18] sm:$0xff]
        %v294 = vld [vmem:[%s2] sm:$0xff]
        %v295 = vld [vmem:[%s2 + $0x8] sm:$0xff]
        %v296 = vld [vmem:[%s2 + $0x10] sm:$0xff]
        %v297 = vld [vmem:[%s2 + $0x18] sm:$0xff]
        %299 = vset.pattern.permute.xlu0 0
        %300 = vperm.xlu0 %299, %v294
        %v301 = vpop.permute.xlu0 %300
        %304 = vset.pattern.permute.xlu0 0
        %305 = vperm.xlu0 %304, %v295
        %v306 = vpop.permute.xlu0 %305
        %309 = vset.pattern.permute.xlu0 0
        %310 = vperm.xlu0 %309, %v296
        %v311 = vpop.permute.xlu0 %310
        %314 = vset.pattern.permute.xlu0 0
        %315 = vperm.xlu0 %314, %v297
        %v316 = vpop.permute.xlu0 %315
        %vm318 = vcmask 261120
        %v320 = vsel %vm318, %v290, 0
        %v323 = vsel %vm318, %v291, 0
        %v326 = vsel %vm318, %v292, 0
        %v329 = vsel %vm318, %v293, 0
        %331 = vmatpush.msra.mxu0 0.0
        %332 = vmatpush.msra.mxu0 0.0
        %333 = vmatpush.msra.mxu0 0.0
        %334 = vmatpush.msra.mxu0 0.0
        %335 = vmatpush.msra.mxu0 0.0
        %336 = vmatpush.msra.mxu0 0.0
        %337 = vmatpush.msra.mxu0 0.0
        %338 = vmatpush.msra.mxu0 0.0
        %339 = vmatpush.msra.mxu0 0.0
        %340 = vmatpush.msra.mxu0 0.0
        %341 = vmatpush.msra.mxu0 0.0
        %342 = vmatpush.msra.mxu0 0.0
        %343 = vmatpush.msra.mxu0 %v288
        %344 = vmatpush.msra.mxu0 %v286
        %345 = vmatpush.msra.mxu0 %v284
        %346 = vmatpush.msra.mxu0 %v282
        %347 = vmatmul.f32.gmra.mxu0 %v320
        %v348 = vpop.f32.mrf.mxu0
        %v349 = vadd.f32 %v301, %v348
        %350 = vmatmul.f32.gmra.mxu0 %v323
        %v351 = vpop.f32.mrf.mxu0
        %v352 = vadd.f32 %v306, %v351
        %353 = vmatmul.f32.gmra.mxu0 %v326
        %v354 = vpop.f32.mrf.mxu0
        %v355 = vadd.f32 %v311, %v354
        %356 = vmatmul.f32.gmra.mxu0 %v329
        %v357 = vpop.f32.mrf.mxu0
        %v358 = vadd.f32 %v316, %v357
        %359 = vdwg.mxu0
        %360 = vmatpush.msra.mxu0 0.0
        %361 = vmatpush.msra.mxu0 0.0
        %362 = vmatpush.msra.mxu0 0.0
        %363 = vmatpush.msra.mxu0 0.0
        %364 = vmatpush.msra.mxu0 0.0
        %365 = vmatpush.msra.mxu0 0.0
        %366 = vmatpush.msra.mxu0 0.0
        %367 = vmatpush.msra.mxu0 0.0
        %368 = vmatpush.msra.mxu0 0.0
        %369 = vmatpush.msra.mxu0 0.0
        %370 = vmatpush.msra.mxu0 0.0
        %371 = vmatpush.msra.mxu0 0.0
        %372 = vmatpush.msra.mxu0 %v289
        %373 = vmatpush.msra.mxu0 %v287
        %374 = vmatpush.msra.mxu0 %v285
        %375 = vmatpush.msra.mxu0 %v283
        %376 = vmatmul.f32.gmra.mxu0 %v320
        %v377 = vpop.f32.mrf.mxu0
        %v378 = vadd.f32 %v301, %v377
        %379 = vmatmul.f32.gmra.mxu0 %v323
        %v380 = vpop.f32.mrf.mxu0
        %v381 = vadd.f32 %v306, %v380
        %382 = vmatmul.f32.gmra.mxu0 %v326
        %v383 = vpop.f32.mrf.mxu0
        %v384 = vadd.f32 %v311, %v383
        %385 = vmatmul.f32.gmra.mxu0 %v329
        %v386 = vpop.f32.mrf.mxu0
        %v387 = vadd.f32 %v316, %v386
        %388 = vdwg.mxu0
        %s389 = sshra.s32 %s264, 7
        %s390 = sand.u32 %s264, 127
        %s391 = smul.addr %s389, 8
        %s392 = scalar_lea.vmem [#allocation2], %s391
        %393 = vst [vmem:[%s392] sm:$0xff] %v349
        %394 = vst [vmem:[%s392 + $0x8] sm:$0xff] %v378
        %395 = vst [vmem:[%s392 + $0x10] sm:$0xff] %v352
        %396 = vst [vmem:[%s392 + $0x18] sm:$0xff] %v381
        %397 = vst [vmem:[%s392 + $0x20] sm:$0xff] %v355
        %398 = vst [vmem:[%s392 + $0x28] sm:$0xff] %v384
        %399 = vst [vmem:[%s392 + $0x30] sm:$0xff] %v358
        %400 = vst [vmem:[%s392 + $0x38] sm:$0xff] %v387
        %v401 = vld [vmem:[#allocation3] sm:$0xff]
        %v402 = vld [vmem:[#allocation3 + $0x8] sm:$0xff]
        %v403 = vld [vmem:[#allocation3 + $0x10] sm:$0xff]
        %v404 = vld [vmem:[#allocation3 + $0x18] sm:$0xff]
        %v405 = vadd.f32 %v349, %v378
        %406 = vadd.xlane.f32.xlu0 %v405
        %v407 = vpop.xlane.xlu0 %406
        %v408 = vadd.f32 %v352, %v381
        %409 = vadd.xlane.f32.xlu0 %v408
        %v410 = vpop.xlane.xlu0 %409
        %v411 = vadd.f32 %v355, %v384
        %412 = vadd.xlane.f32.xlu0 %v411
        %v413 = vpop.xlane.xlu0 %412
        %v414 = vadd.f32 %v358, %v387
        %415 = vadd.xlane.f32.xlu0 %v414
        %v416 = vpop.xlane.xlu0 %415
        %v417 = vadd.f32 %v401, %v407
        %v418 = vadd.f32 %v402, %v410
        %v419 = vadd.f32 %v403, %v413
        %v420 = vadd.f32 %v404, %v416
        %vm421 = vcmask 7168
        %422 = vst.msk [vmem:[#allocation3] sm:$0xff] %vm421, %v417
        %423 = vst.msk [vmem:[#allocation3 + $0x8] sm:$0xff] %vm421, %v418
        %424 = vst.msk [vmem:[#allocation3 + $0x10] sm:$0xff] %vm421, %v419
        %425 = vst.msk [vmem:[#allocation3 + $0x18] sm:$0xff] %vm421, %v420
      $region44: #{run.3} parent=39 // pred_fallthru
        _
      %p426 = scmp.eq.s32.totalorder %s20, 1
      // Predicated region
      $region49: #{run.3} parent=39 // pred_check
        %p427 = pneg %p426
      $region50: #{run.3} parent=39 // pred_check_branch
        %429 = sbr.rel (%p427) target = $region52
      $region51: #{run.3} parent=39 // pred_region
        %v430 = vld [vmem:[#allocation3] sm:$0xff]
        %v431 = vld [vmem:[#allocation3 + $0x8] sm:$0xff]
        %v432 = vld [vmem:[#allocation3 + $0x10] sm:$0xff]
        %v433 = vld [vmem:[#allocation3 + $0x18] sm:$0xff]
        %v434 = vmul.f32 %v430, 0.00390625
        %v435 = vmul.f32 %v431, 0.00390625
        %v436 = vmul.f32 %v432, 0.00390625
        %v437 = vmul.f32 %v433, 0.00390625
        %s438 = sshra.s32 %s264, 7
        %s439 = sand.u32 %s264, 127
        %s440 = smul.addr %s438, 8
        %s441 = scalar_lea.vmem [#allocation2], %s440
        %v442 = vld [vmem:[%s441] sm:$0xff]
        %v443 = vld [vmem:[%s441 + $0x8] sm:$0xff]
        %v444 = vld [vmem:[%s441 + $0x10] sm:$0xff]
        %v445 = vld [vmem:[%s441 + $0x18] sm:$0xff]
        %v446 = vld [vmem:[%s441 + $0x20] sm:$0xff]
        %v447 = vld [vmem:[%s441 + $0x28] sm:$0xff]
        %v448 = vld [vmem:[%s441 + $0x30] sm:$0xff]
        %v449 = vld [vmem:[%s441 + $0x38] sm:$0xff]
        %451 = vset.pattern.permute.xlu0 0
        %452 = vperm.xlu0 %451, %v434
        %v453 = vpop.permute.xlu0 %452
        %456 = vset.pattern.permute.xlu0 0
        %457 = vperm.xlu0 %456, %v435
        %v458 = vpop.permute.xlu0 %457
        %461 = vset.pattern.permute.xlu0 0
        %462 = vperm.xlu0 %461, %v436
        %v463 = vpop.permute.xlu0 %462
        %466 = vset.pattern.permute.xlu0 0
        %467 = vperm.xlu0 %466, %v437
        %v468 = vpop.permute.xlu0 %467
        %v470 = vsub.f32 %v442, %v453
        %v471 = vsub.f32 %v443, %v453
        %v472 = vsub.f32 %v444, %v458
        %v473 = vsub.f32 %v445, %v458
        %v474 = vsub.f32 %v446, %v463
        %v475 = vsub.f32 %v447, %v463
        %v476 = vsub.f32 %v448, %v468
        %v477 = vsub.f32 %v449, %v468
        %v478 = vld [vmem:[#allocation4] sm:$0xff]
        %v479 = vld [vmem:[#allocation4 + $0x8] sm:$0xff]
        %v480 = vld [vmem:[#allocation4 + $0x10] sm:$0xff]
        %v481 = vld [vmem:[#allocation4 + $0x18] sm:$0xff]
        %v482 = vmul.f32 %v470, %v470
        %v483 = vmul.f32 %v471, %v471
        %v484 = vmul.f32 %v472, %v472
        %v485 = vmul.f32 %v473, %v473
        %v486 = vmul.f32 %v474, %v474
        %v487 = vmul.f32 %v475, %v475
        %v488 = vmul.f32 %v476, %v476
        %v489 = vmul.f32 %v477, %v477
        %v490 = vadd.f32 %v482, %v483
        %491 = vadd.xlane.f32.xlu0 %v490
        %v492 = vpop.xlane.xlu0 %491
        %v493 = vadd.f32 %v484, %v485
        %494 = vadd.xlane.f32.xlu0 %v493
        %v495 = vpop.xlane.xlu0 %494
        %v496 = vadd.f32 %v486, %v487
        %497 = vadd.xlane.f32.xlu0 %v496
        %v498 = vpop.xlane.xlu0 %497
        %v499 = vadd.f32 %v488, %v489
        %500 = vadd.xlane.f32.xlu0 %v499
        %v501 = vpop.xlane.xlu0 %500
        %v502 = vadd.f32 %v478, %v492
        %v503 = vadd.f32 %v479, %v495
        %v504 = vadd.f32 %v480, %v498
        %v505 = vadd.f32 %v481, %v501
        %vm506 = vcmask 7168
        %507 = vst.msk [vmem:[#allocation4] sm:$0xff] %vm506, %v502
        %508 = vst.msk [vmem:[#allocation4 + $0x8] sm:$0xff] %vm506, %v503
        %509 = vst.msk [vmem:[#allocation4 + $0x10] sm:$0xff] %vm506, %v504
        %510 = vst.msk [vmem:[#allocation4 + $0x18] sm:$0xff] %vm506, %v505
      $region52: #{run.3} parent=39 // pred_fallthru
        _
      %p511 = scmp.eq.s32.totalorder %s20, 2
      // Predicated region
      $region53: #{run.3} parent=39 // pred_check
        %p512 = pneg %p511
      $region54: #{run.3} parent=39 // pred_check_branch
        %514 = sbr.rel (%p512) target = $region56
      $region55: #{run.3} parent=39 // pred_region
        %v515 = vld [vmem:[#allocation3] sm:$0xff]
        %v516 = vld [vmem:[#allocation3 + $0x8] sm:$0xff]
        %v517 = vld [vmem:[#allocation3 + $0x10] sm:$0xff]
        %v518 = vld [vmem:[#allocation3 + $0x18] sm:$0xff]
        %v519 = vmul.f32 %v515, 0.00390625
        %v520 = vmul.f32 %v516, 0.00390625
        %v521 = vmul.f32 %v517, 0.00390625
        %v522 = vmul.f32 %v518, 0.00390625
        %v523 = vld [vmem:[#allocation4] sm:$0xff]
        %v524 = vld [vmem:[#allocation4 + $0x8] sm:$0xff]
        %v525 = vld [vmem:[#allocation4 + $0x10] sm:$0xff]
        %v526 = vld [vmem:[#allocation4 + $0x18] sm:$0xff]
        %v527 = vmul.f32 %v523, 0.00390625
        %v528 = vmul.f32 %v524, 0.00390625
        %v529 = vmul.f32 %v525, 0.00390625
        %v530 = vmul.f32 %v526, 0.00390625
        %v531 = vadd.f32 %v527, 1e-05
        %v532 = vadd.f32 %v528, 1e-05
        %v533 = vadd.f32 %v529, 1e-05
        %v534 = vadd.f32 %v530, 1e-05
        %v535 = vrsqrt.pop %v531
        %v536 = vmul.f32 %v535, %v531
        %v537 = vmul.f32 %v536, %v535
        %v538 = vmul.f32 0.5, %v537
        %v539 = vsub.f32 1.5, %v538
        %v540 = vmul.f32 %v535, %v539
        %vm541 = vweird.f32 %v531
        %vm542 = vweird.f32 %v535
        %vm543 = vmor %vm541, %vm542
        %v544 = vsel %vm543, %v535, %v540
        %v545 = vrsqrt.pop %v532
        %v546 = vmul.f32 %v545, %v532
        %v547 = vmul.f32 %v546, %v545
        %v548 = vmul.f32 0.5, %v547
        %v549 = vsub.f32 1.5, %v548
        %v550 = vmul.f32 %v545, %v549
        %vm551 = vweird.f32 %v532
        %vm552 = vweird.f32 %v545
        %vm553 = vmor %vm551, %vm552
        %v554 = vsel %vm553, %v545, %v550
        %v555 = vrsqrt.pop %v533
        %v556 = vmul.f32 %v555, %v533
        %v557 = vmul.f32 %v556, %v555
        %v558 = vmul.f32 0.5, %v557
        %v559 = vsub.f32 1.5, %v558
        %v560 = vmul.f32 %v555, %v559
        %vm561 = vweird.f32 %v533
        %vm562 = vweird.f32 %v555
        %vm563 = vmor %vm561, %vm562
        %v564 = vsel %vm563, %v555, %v560
        %v565 = vrsqrt.pop %v534
        %v566 = vmul.f32 %v565, %v534
        %v567 = vmul.f32 %v566, %v565
        %v568 = vmul.f32 0.5, %v567
        %v569 = vsub.f32 1.5, %v568
        %v570 = vmul.f32 %v565, %v569
        %vm571 = vweird.f32 %v534
        %vm572 = vweird.f32 %v565
        %vm573 = vmor %vm571, %vm572
        %v574 = vsel %vm573, %v565, %v570
        %v575 = vld [vmem:[%s3] sm:$0xff]
        %v576 = vld [vmem:[%s3 + $0x8] sm:$0xff]
        %v577 = vld [vmem:[%s3 + $0x10] sm:$0xff]
        %v578 = vld [vmem:[%s3 + $0x18] sm:$0xff]
        %v579 = vmul.f32 %v544, %v575
        %v580 = vmul.f32 %v554, %v576
        %v581 = vmul.f32 %v564, %v577
        %v582 = vmul.f32 %v574, %v578
        %s583 = sshra.s32 %s264, 7
        %s584 = sand.u32 %s264, 127
        %s585 = smul.addr %s583, 8
        %s586 = scalar_lea.vmem [#allocation2], %s585
        %v587 = vld [vmem:[%s586] sm:$0xff]
        %v588 = vld [vmem:[%s586 + $0x8] sm:$0xff]
        %v589 = vld [vmem:[%s586 + $0x10] sm:$0xff]
        %v590 = vld [vmem:[%s586 + $0x18] sm:$0xff]
        %v591 = vld [vmem:[%s586 + $0x20] sm:$0xff]
        %v592 = vld [vmem:[%s586 + $0x28] sm:$0xff]
        %v593 = vld [vmem:[%s586 + $0x30] sm:$0xff]
        %v594 = vld [vmem:[%s586 + $0x38] sm:$0xff]
        %596 = vset.pattern.permute.xlu0 0
        %597 = vperm.xlu0 %596, %v519
        %v598 = vpop.permute.xlu0 %597
        %601 = vset.pattern.permute.xlu0 0
        %602 = vperm.xlu0 %601, %v520
        %v603 = vpop.permute.xlu0 %602
        %606 = vset.pattern.permute.xlu0 0
        %607 = vperm.xlu0 %606, %v521
        %v608 = vpop.permute.xlu0 %607
        %611 = vset.pattern.permute.xlu0 0
        %612 = vperm.xlu0 %611, %v522
        %v613 = vpop.permute.xlu0 %612
        %v615 = vsub.f32 %v587, %v598
        %v616 = vsub.f32 %v588, %v598
        %v617 = vsub.f32 %v589, %v603
        %v618 = vsub.f32 %v590, %v603
        %v619 = vsub.f32 %v591, %v608
        %v620 = vsub.f32 %v592, %v608
        %v621 = vsub.f32 %v593, %v613
        %v622 = vsub.f32 %v594, %v613
        %624 = vset.pattern.permute.xlu0 0
        %625 = vperm.xlu0 %624, %v579
        %v626 = vpop.permute.xlu0 %625
        %629 = vset.pattern.permute.xlu0 0
        %630 = vperm.xlu0 %629, %v580
        %v631 = vpop.permute.xlu0 %630
        %634 = vset.pattern.permute.xlu0 0
        %635 = vperm.xlu0 %634, %v581
        %v636 = vpop.permute.xlu0 %635
        %639 = vset.pattern.permute.xlu0 0
        %640 = vperm.xlu0 %639, %v582
        %v641 = vpop.permute.xlu0 %640
        %v643 = vmul.f32 %v615, %v626
        %v644 = vmul.f32 %v616, %v626
        %v645 = vmul.f32 %v617, %v631
        %v646 = vmul.f32 %v618, %v631
        %v647 = vmul.f32 %v619, %v636
        %v648 = vmul.f32 %v620, %v636
        %v649 = vmul.f32 %v621, %v641
        %v650 = vmul.f32 %v622, %v641
        %v651 = vld [vmem:[%s4] sm:$0xff]
        %v652 = vld [vmem:[%s4 + $0x8] sm:$0xff]
        %v653 = vld [vmem:[%s4 + $0x10] sm:$0xff]
        %v654 = vld [vmem:[%s4 + $0x18] sm:$0xff]
        %656 = vset.pattern.permute.xlu0 0
        %657 = vperm.xlu0 %656, %v651
        %v658 = vpop.permute.xlu0 %657
        %661 = vset.pattern.permute.xlu0 0
        %662 = vperm.xlu0 %661, %v652
        %v663 = vpop.permute.xlu0 %662
        %666 = vset.pattern.permute.xlu0 0
        %667 = vperm.xlu0 %666, %v653
        %v668 = vpop.permute.xlu0 %667
        %671 = vset.pattern.permute.xlu0 0
        %672 = vperm.xlu0 %671, %v654
        %v673 = vpop.permute.xlu0 %672
        %v675 = vadd.f32 %v643, %v658
        %v676 = vadd.f32 %v644, %v658
        %v677 = vadd.f32 %v645, %v663
        %v678 = vadd.f32 %v646, %v663
        %v679 = vadd.f32 %v647, %v668
        %v680 = vadd.f32 %v648, %v668
        %v681 = vadd.f32 %v649, %v673
        %v682 = vadd.f32 %v650, %v673
        %683 = vst [vmem:[%s260] sm:$0xff] %v675
        %684 = vst [vmem:[%s260 + $0x8] sm:$0xff] %v676
        %685 = vst [vmem:[%s260 + $0x10] sm:$0xff] %v677
        %686 = vst [vmem:[%s260 + $0x18] sm:$0xff] %v678
        %687 = vst [vmem:[%s260 + $0x20] sm:$0xff] %v679
        %688 = vst [vmem:[%s260 + $0x28] sm:$0xff] %v680
        %689 = vst [vmem:[%s260 + $0x30] sm:$0xff] %v681
        %690 = vst [vmem:[%s260 + $0x38] sm:$0xff] %v682
      $region56: #{run.3} parent=39 // pred_fallthru
        _
      %p691 = scmp.eq.s32.totalorder %s20, 2
      %s692 = scalar_select %p691, %s21, 0
      %s693 = smul.u32 2, %s692
      %p694 = scmp.lt.s32.totalorder %s693, 1
      %s695 = scalar_select %p694, %s693, 1
      %s696 = smul.addr %s695, 8
      %s697 = scalar_lea.vmem %s5, %s696
      // Predicated region
      $region57: #{run.3} parent=39 // pred_check
        %p698 = pneg %p164
      $region58: #{run.3} parent=39 // pred_check_branch
        %700 = sbr.rel (%p698) target = $region60
      $region59: #{run.3} parent=39 // pred_region
        %p701 = scmp.eq.s32.totalorder %s20, 2
        %s702 = scalar_select %p701, %s21, 0
        %s703 = smul.u32 2, %s702
      $region60: #{run.3} parent=39 // pred_fallthru
        _
    $region40: #{run.3} parent=5 // pred_fallthru
      _
    %p704 = scmp.le.s32.totalorder 2, %s11
    // Predicated region
    $region61: #{run.3} parent=5 // pred_check
      %p705 = pneg %p704
    $region62: #{run.3} parent=5 // pred_check_branch
      %707 = sbr.rel (%p705) target = $region64
    $region63: #{run.3} parent=5 // pred_region
      %s708 = ssub.s32 %s11, 2
      // Predicated region
      $region65: #{run.3} parent=63 // pred_check
        %p709 = pneg %p170
      $region66: #{run.3} parent=63 // pred_check_branch
        %711 = sbr.rel (%p709) target = $region68
      $region67: #{run.3} parent=63 // pred_region
        %p712 = scmp.eq.s32.totalorder %s22, 2
        %s713 = scalar_select %p712, %s23, 0
        %s714 = smul.u32 2, %s713
        %p715 = scmp.lt.s32.totalorder %s714, 1
        %s716 = scalar_select %p715, %s714, 1
        %s717 = smul.addr %s716, 8
        %s718 = scalar_lea.vmem %s5, %s717
      $region68: #{run.3} parent=63 // pred_fallthru
        _
    $region64: #{run.3} parent=5 // pred_fallthru
      _
  $region6: #{run.3} parent=0 // loop_footer
    %s15 = sadd.s32 1, %s11
  $region7: #{run.3} parent=0 // loop_footer_branch
    %10 = sbr.rel target = $region3
  $region8: #{run.3} parent=0 // loop_exit
    _

</llo_original>
